<compile_context>
chip_gen: v7x
topology: tpu7x:2x2x1
jax: 0.10.0
libtpu: 0.0.40
codegen_flags: <defaults>
</compile_context>

<pallas_src>
import functools

import jax
import jax.numpy as jnp
from jax import lax
from jax.experimental import pallas as pl
from jax.experimental.pallas import tpu as pltpu

LANE = 128


def _round_up(x, m):
    return ((x + m - 1) // m) * m


# ---------------------------------------------------------------------------
# Pallas kernel
# ---------------------------------------------------------------------------
def _cnn_predict_kernel(x_ref,        # (H+2, W+2, Cin)       bf16  (batch dim squeezed)
                        wc_ref,       # (9, Cin, COUT_PAD)    bf16
                        bc_ref,       # (1, COUT_PAD)         f32
                        wd_ref,       # (COUT_PAD, NC_PAD)    f32
                        bd_ref,       # (1, NC_PAD)           f32
                        out_ref,      # (1, 1, NC_PAD)        f32
                        pooled_acc,   # VMEM (1, COUT_PAD)    f32 scratch
                        *, row_tile, width, cout_pad, inv_hw):
    t = pl.program_id(1)
    nt = pl.num_programs(1)

    # Init the per-image pooled-sum accumulator on the first row tile.
    @pl.when(t == 0)
    def _init():
        pooled_acc[...] = jnp.zeros_like(pooled_acc)

    row0 = pl.multiple_of(t * row_tile, row_tile)

    # Padded rows needed for this tile: row0 .. row0 + row_tile + 1.
    slab = x_ref[pl.ds(row0, row_tile + 2), :, :]            # (TH+2, W+2, Cin) bf16
    cin = slab.shape[-1]
    npix = row_tile * width

    # Three dx-shifted views, flattened to ((TH+2)*W, Cin).  The channel (lane)
    # dim is preserved and W is sublane-tile aligned, so the reshape is free.
    slabs = [slab[:, dx:dx + width, :].reshape((row_tile + 2) * width, cin)
             for dx in range(3)]

    bias = bc_ref[...]                                       # (1, COUT_PAD) f32
    w_taps = [wc_ref[k] for k in range(9)]                   # (Cin, COUT_PAD) bf16

    # 3x3 conv for the whole row tile: 9 MXU matmuls, f32 accumulation.
    acc = jnp.zeros((npix, cout_pad), jnp.float32)
    for dy in range(3):
        base = dy * width                                    # multiple of W -> aligned
        for dx in range(3):
            acc = acc + jnp.dot(slabs[dx][base:base + npix, :],
                                w_taps[dy * 3 + dx],
                                preferred_element_type=jnp.float32)

    feat = jnp.maximum(acc + bias, 0.0)                      # bias + ReLU (TH*W, COUT_PAD)
    # Global-average-pool partial sum for this tile (XLU cross-sublane reduce).
    pooled_acc[...] += jnp.sum(feat, axis=0, keepdims=True)

    # Finalize on the last row tile: average, dense head, softmax.
    @pl.when(t == nt - 1)
    def _finalize():
        pooled = pooled_acc[...] * inv_hw                    # (1, COUT_PAD)
        logits = jnp.dot(pooled, wd_ref[...],
                         preferred_element_type=jnp.float32) + bd_ref[...]
        m = jnp.max(logits, axis=-1, keepdims=True)
        e = jnp.exp(logits - m)
        denom = jnp.sum(e, axis=-1, keepdims=True)
        probs = e * pl.reciprocal(denom, approx=False)
        out_ref[0] = probs.astype(out_ref.dtype)


# ---------------------------------------------------------------------------
# Parameter construction (deterministic; stands in for the Keras checkpoint)
# ---------------------------------------------------------------------------
def make_params(cin, cout, num_classes, key):
    k1, k2, k3, k4 = jax.random.split(key, 4)
    wconv = jax.random.normal(k1, (3, 3, cin, cout), jnp.float32) * 0.1   # HWIO
    bconv = jax.random.normal(k2, (cout,), jnp.float32) * 0.1
    wd = jax.random.normal(k3, (cout, num_classes), jnp.float32) * 0.1
    bd = jax.random.normal(k4, (num_classes,), jnp.float32) * 0.1
    return {"wconv": wconv, "bconv": bconv, "wd": wd, "bd": bd}


# ---------------------------------------------------------------------------
# Wrapper: layout transpose, zero-pad, lane padding, pallas_call
# ---------------------------------------------------------------------------
@functools.partial(jax.jit, static_argnames=("row_tile",))
def keras_model_wrapper_forward(x_nchw, wconv, bconv, wd, bd, row_tile=8):
    """Equivalent of KerasModelWrapper.forward(x): NCHW input -> (B, NC) probs."""
    B, Cin, H, W = x_nchw.shape
    Cout = wconv.shape[-1]
    NC = wd.shape[-1]
    COUT_PAD = _round_up(Cout, LANE)
    NC_PAD = _round_up(NC, LANE)

    th = row_tile if H % row_tile == 0 else H
    nt = H // th

    # NCHW (PyTorch) -> NHWC (Keras), 'same' zero pad, bf16 for the MXU.
    x = jnp.transpose(x_nchw, (0, 2, 3, 1)).astype(jnp.bfloat16)
    x_pad = jnp.pad(x, ((0, 0), (1, 1), (1, 1), (0, 0)))

    # Conv weights HWIO -> (9, Cin, Cout), lane-padded to 128, bf16.
    wc = jnp.pad(wconv.reshape(9, Cin, Cout),
                 ((0, 0), (0, 0), (0, COUT_PAD - Cout))).astype(jnp.bfloat16)
    bc = jnp.pad(bconv.reshape(1, Cout),
                 ((0, 0), (0, COUT_PAD - Cout))).astype(jnp.float32)
    wdp = jnp.pad(wd, ((0, COUT_PAD - Cout), (0, NC_PAD - NC))).astype(jnp.float32)
    # Padded class logits get a huge negative bias -> exp underflows to 0.
    bdp = jnp.pad(bd.reshape(1, NC), ((0, 0), (0, NC_PAD - NC)),
                  constant_values=-1e30).astype(jnp.float32)

    kernel = functools.partial(_cnn_predict_kernel, row_tile=th, width=W,
                               cout_pad=COUT_PAD, inv_hw=1.0 / (H * W))

    grid_spec = pltpu.PrefetchScalarGridSpec(
        num_scalar_prefetch=0,
        grid=(B, nt),
        in_specs=[
            # One padded image resident per batch step (reused across row tiles).
            pl.BlockSpec((None, H + 2, W + 2, Cin), lambda b, t: (b, 0, 0, 0)),
            # Constant weights/biases: constant index_map -> DMA'd once, resident.
            pl.BlockSpec((9, Cin, COUT_PAD), lambda b, t: (0, 0, 0)),
            pl.BlockSpec((1, COUT_PAD), lambda b, t: (0, 0)),
            pl.BlockSpec((COUT_PAD, NC_PAD), lambda b, t: (0, 0)),
            pl.BlockSpec((1, NC_PAD), lambda b, t: (0, 0)),
        ],
        out_specs=pl.BlockSpec((1, 1, NC_PAD), lambda b, t: (b, 0, 0)),
        scratch_shapes=[pltpu.VMEM((1, COUT_PAD), jnp.float32)],
    )

    probs_pad = pl.pallas_call(
        kernel,
        out_shape=jax.ShapeDtypeStruct((B, 1, NC_PAD), jnp.float32),
        grid_spec=grid_spec,
        compiler_params=pltpu.CompilerParams(
            dimension_semantics=("parallel", "arbitrary")),
    )(x_pad, wc, bc, wdp, bdp)

    return probs_pad.reshape(B, NC_PAD)[:, :NC]


# ---------------------------------------------------------------------------
# Pure-JAX reference (same bf16-rounded conv inputs, f32 accumulation)
# ---------------------------------------------------------------------------
def reference_forward(x_nchw, wconv, bconv, wd, bd):
    x = jnp.transpose(x_nchw, (0, 2, 3, 1)).astype(jnp.bfloat16).astype(jnp.float32)
    w = wconv.astype(jnp.bfloat16).astype(jnp.float32)
    feat = lax.conv_general_dilated(
        x, w, window_strides=(1, 1), padding="SAME",
        dimension_numbers=("NHWC", "HWIO", "NHWC"))
    feat = jax.nn.relu(feat + bconv)
    pooled = jnp.mean(feat, axis=(1, 2))
    logits = pooled @ wd + bd
    return jax.nn.softmax(logits, axis=-1)


if __name__ == "__main__":
    B, Cin, H, W = 2, 4, 16, 16
    Cout, NC = 32, 10

    key = jax.random.PRNGKey(0)
    kx, kp = jax.random.split(key)
    x = jax.random.normal(kx, (B, Cin, H, W), jnp.float32)   # PyTorch NCHW input
    params = make_params(Cin, Cout, NC, kp)

    out = keras_model_wrapper_forward(
        x, params["wconv"], params["bconv"], params["wd"], params["bd"])
    out = jax.block_until_ready(out)

    ref = reference_forward(
        x, params["wconv"], params["bconv"], params["wd"], params["bd"])

    assert out.shape == (B, NC)
    assert jnp.allclose(out, ref, atol=1e-3, rtol=1e-3), "mismatch vs reference"
    assert jnp.allclose(jnp.sum(out, axis=-1), 1.0, atol=1e-4)

    print("KERNEL_OK")
</pallas_src>

<mosaic_0001>
module attributes {stable_mosaic.version = 11 : i64} {
  func.func @_cnn_predict_kernel(%arg0: i32, %arg1: i32, %arg2: memref<1x18x18x4xbf16, #tpu.memory_space<vmem>>, %arg3: memref<9x4x128xbf16, #tpu.memory_space<vmem>>, %arg4: memref<1x128xf32, #tpu.memory_space<vmem>>, %arg5: memref<128x128xf32, #tpu.memory_space<vmem>>, %arg6: memref<1x128xf32, #tpu.memory_space<vmem>>, %arg7: memref<1x1x128xf32, #tpu.memory_space<vmem>>, %arg8: memref<1x128xf32, #tpu.memory_space<vmem>>) attributes {dimension_semantics = [#tpu.dimension_semantics<parallel>, #tpu.dimension_semantics<arbitrary>], iteration_bounds = array<i64: 2, 2>, scalar_prefetch = 0 : i64, scratch_operands = 1 : i64, tpu.core_type = #tpu.core_type<tc>, window_params = [{transform_indices = @transform_0, window_bounds = array<i64: 1, 18, 18, 4>}, {pipeline_mode = #tpu.pipeline_mode<synchronous>, transform_indices = @transform_1, window_bounds = array<i64: 9, 4, 128>}, {pipeline_mode = #tpu.pipeline_mode<synchronous>, transform_indices = @transform_2, window_bounds = array<i64: 1, 128>}, {pipeline_mode = #tpu.pipeline_mode<synchronous>, transform_indices = @transform_3, window_bounds = array<i64: 128, 128>}, {pipeline_mode = #tpu.pipeline_mode<synchronous>, transform_indices = @transform_4, window_bounds = array<i64: 1, 128>}, {transform_indices = @transform_5, window_bounds = array<i64: 1, 1, 128>}]} {
    %c0_i32 = arith.constant 0 : i32
    %0 = arith.cmpi eq, %arg1, %c0_i32 : i32
    %1 = arith.extui %0 : i1 to i32
    %c0_i32_0 = arith.constant 0 : i32
    %2 = arith.cmpi ne, %1, %c0_i32_0 : i32
    scf.if %2 {
      %cst_40 = arith.constant 0.000000e+00 : f32
      %73 = vector.broadcast %cst_40 : f32 to vector<1x128xf32>
      %c0_41 = arith.constant 0 : index
      %c0_42 = arith.constant 0 : index
      %74 = vector.load %arg8[%c0_41, %c0_42] : memref<1x128xf32, #tpu.memory_space<vmem>>, vector<1x128xf32>
      tpu.vector_store %arg8[%c0_41, %c0_42], %73 {strides = array<i32>} : memref<1x128xf32, #tpu.memory_space<vmem>>, vector<1x128xf32>,
    } else {
    }
    %c8_i32 = arith.constant 8 : i32
    %3 = arith.muli %arg1, %c8_i32 : i32
    %4 = tpu.assume_multiple %3, 8 : i32
    %c0 = arith.constant 0 : index
    %5 = arith.index_cast %4 : i32 to index
    %c0_1 = arith.constant 0 : index
    %c0_2 = arith.constant 0 : index
    %6 = vector.load %arg2[%c0, %5, %c0_1, %c0_2] : memref<1x18x18x4xbf16, #tpu.memory_space<vmem>>, vector<1x10x18x4xbf16>
    %7 = vector.shape_cast %6 : vector<1x10x18x4xbf16> to vector<10x18x4xbf16>
    %8 = vector.extract_strided_slice %7 {offsets = [0, 0, 0], sizes = [10, 16, 4], strides = [1, 1, 1]} : vector<10x18x4xbf16> to vector<10x16x4xbf16>
    %9 = vector.shape_cast %8 : vector<10x16x4xbf16> to vector<160x4xbf16>
    %10 = vector.extract_strided_slice %7 {offsets = [0, 1, 0], sizes = [10, 16, 4], strides = [1, 1, 1]} : vector<10x18x4xbf16> to vector<10x16x4xbf16>
    %11 = vector.shape_cast %10 : vector<10x16x4xbf16> to vector<160x4xbf16>
    %12 = vector.extract_strided_slice %7 {offsets = [0, 2, 0], sizes = [10, 16, 4], strides = [1, 1, 1]} : vector<10x18x4xbf16> to vector<10x16x4xbf16>
    %13 = vector.shape_cast %12 : vector<10x16x4xbf16> to vector<160x4xbf16>
    %c0_3 = arith.constant 0 : index
    %c0_4 = arith.constant 0 : index
    %14 = vector.load %arg4[%c0_3, %c0_4] : memref<1x128xf32, #tpu.memory_space<vmem>>, vector<1x128xf32>
    %c0_5 = arith.constant 0 : index
    %c0_6 = arith.constant 0 : index
    %c0_7 = arith.constant 0 : index
    %15 = vector.load %arg3[%c0_5, %c0_6, %c0_7] : memref<9x4x128xbf16, #tpu.memory_space<vmem>>, vector<1x4x128xbf16>
    %16 = vector.shape_cast %15 : vector<1x4x128xbf16> to vector<4x128xbf16>
    %c1 = arith.constant 1 : index
    %c0_8 = arith.constant 0 : index
    %c0_9 = arith.constant 0 : index
    %17 = vector.load %arg3[%c1, %c0_8, %c0_9] : memref<9x4x128xbf16, #tpu.memory_space<vmem>>, vector<1x4x128xbf16>
    %18 = vector.shape_cast %17 : vector<1x4x128xbf16> to vector<4x128xbf16>
    %c2 = arith.constant 2 : index
    %c0_10 = arith.constant 0 : index
    %c0_11 = arith.constant 0 : index
    %19 = vector.load %arg3[%c2, %c0_10, %c0_11] : memref<9x4x128xbf16, #tpu.memory_space<vmem>>, vector<1x4x128xbf16>
    %20 = vector.shape_cast %19 : vector<1x4x128xbf16> to vector<4x128xbf16>
    %c3 = arith.constant 3 : index
    %c0_12 = arith.constant 0 : index
    %c0_13 = arith.constant 0 : index
    %21 = vector.load %arg3[%c3, %c0_12, %c0_13] : memref<9x4x128xbf16, #tpu.memory_space<vmem>>, vector<1x4x128xbf16>
    %22 = vector.shape_cast %21 : vector<1x4x128xbf16> to vector<4x128xbf16>
    %c4 = arith.constant 4 : index
    %c0_14 = arith.constant 0 : index
    %c0_15 = arith.constant 0 : index
    %23 = vector.load %arg3[%c4, %c0_14, %c0_15] : memref<9x4x128xbf16, #tpu.memory_space<vmem>>, vector<1x4x128xbf16>
    %24 = vector.shape_cast %23 : vector<1x4x128xbf16> to vector<4x128xbf16>
    %c5 = arith.constant 5 : index
    %c0_16 = arith.constant 0 : index
    %c0_17 = arith.constant 0 : index
    %25 = vector.load %arg3[%c5, %c0_16, %c0_17] : memref<9x4x128xbf16, #tpu.memory_space<vmem>>, vector<1x4x128xbf16>
    %26 = vector.shape_cast %25 : vector<1x4x128xbf16> to vector<4x128xbf16>
    %c6 = arith.constant 6 : index
    %c0_18 = arith.constant 0 : index
    %c0_19 = arith.constant 0 : index
    %27 = vector.load %arg3[%c6, %c0_18, %c0_19] : memref<9x4x128xbf16, #tpu.memory_space<vmem>>, vector<1x4x128xbf16>
    %28 = vector.shape_cast %27 : vector<1x4x128xbf16> to vector<4x128xbf16>
    %c7 = arith.constant 7 : index
    %c0_20 = arith.constant 0 : index
    %c0_21 = arith.constant 0 : index
    %29 = vector.load %arg3[%c7, %c0_20, %c0_21] : memref<9x4x128xbf16, #tpu.memory_space<vmem>>, vector<1x4x128xbf16>
    %30 = vector.shape_cast %29 : vector<1x4x128xbf16> to vector<4x128xbf16>
    %c8 = arith.constant 8 : index
    %c0_22 = arith.constant 0 : index
    %c0_23 = arith.constant 0 : index
    %31 = vector.load %arg3[%c8, %c0_22, %c0_23] : memref<9x4x128xbf16, #tpu.memory_space<vmem>>, vector<1x4x128xbf16>
    %32 = vector.shape_cast %31 : vector<1x4x128xbf16> to vector<4x128xbf16>
    %cst = arith.constant 0.000000e+00 : f32
    %33 = vector.broadcast %cst : f32 to vector<128x128xf32>
    %34 = vector.extract_strided_slice %9 {offsets = [0, 0], sizes = [128, 4], strides = [1, 1]} : vector<160x4xbf16> to vector<128x4xbf16>
    %cst_24 = arith.constant dense<0.000000e+00> : vector<128x128xf32>
    %35 = tpu.matmul %34, %16, %cst_24 {dimension_numbers = #tpu.dot_dimension_numbers<[1], [0], [0], [1], [0, 0, 1, 1], [], []>} : vector<128x4xbf16>, vector<4x128xbf16>, vector<128x128xf32> -> vector<128x128xf32>
    %36 = arith.addf %33, %35 : vector<128x128xf32>
    %37 = vector.extract_strided_slice %11 {offsets = [0, 0], sizes = [128, 4], strides = [1, 1]} : vector<160x4xbf16> to vector<128x4xbf16>
    %cst_25 = arith.constant dense<0.000000e+00> : vector<128x128xf32>
    %38 = tpu.matmul %37, %18, %cst_25 {dimension_numbers = #tpu.dot_dimension_numbers<[1], [0], [0], [1], [0, 0, 1, 1], [], []>} : vector<128x4xbf16>, vector<4x128xbf16>, vector<128x128xf32> -> vector<128x128xf32>
    %39 = arith.addf %36, %38 : vector<128x128xf32>
    %40 = vector.extract_strided_slice %13 {offsets = [0, 0], sizes = [128, 4], strides = [1, 1]} : vector<160x4xbf16> to vector<128x4xbf16>
    %cst_26 = arith.constant dense<0.000000e+00> : vector<128x128xf32>
    %41 = tpu.matmul %40, %20, %cst_26 {dimension_numbers = #tpu.dot_dimension_numbers<[1], [0], [0], [1], [0, 0, 1, 1], [], []>} : vector<128x4xbf16>, vector<4x128xbf16>, vector<128x128xf32> -> vector<128x128xf32>
    %42 = arith.addf %39, %41 : vector<128x128xf32>
    %43 = vector.extract_strided_slice %9 {offsets = [16, 0], sizes = [128, 4], strides = [1, 1]} : vector<160x4xbf16> to vector<128x4xbf16>
    %cst_27 = arith.constant dense<0.000000e+00> : vector<128x128xf32>
    %44 = tpu.matmul %43, %22, %cst_27 {dimension_numbers = #tpu.dot_dimension_numbers<[1], [0], [0], [1], [0, 0, 1, 1], [], []>} : vector<128x4xbf16>, vector<4x128xbf16>, vector<128x128xf32> -> vector<128x128xf32>
    %45 = arith.addf %42, %44 : vector<128x128xf32>
    %46 = vector.extract_strided_slice %11 {offsets = [16, 0], sizes = [128, 4], strides = [1, 1]} : vector<160x4xbf16> to vector<128x4xbf16>
    %cst_28 = arith.constant dense<0.000000e+00> : vector<128x128xf32>
    %47 = tpu.matmul %46, %24, %cst_28 {dimension_numbers = #tpu.dot_dimension_numbers<[1], [0], [0], [1], [0, 0, 1, 1], [], []>} : vector<128x4xbf16>, vector<4x128xbf16>, vector<128x128xf32> -> vector<128x128xf32>
    %48 = arith.addf %45, %47 : vector<128x128xf32>
    %49 = vector.extract_strided_slice %13 {offsets = [16, 0], sizes = [128, 4], strides = [1, 1]} : vector<160x4xbf16> to vector<128x4xbf16>
    %cst_29 = arith.constant dense<0.000000e+00> : vector<128x128xf32>
    %50 = tpu.matmul %49, %26, %cst_29 {dimension_numbers = #tpu.dot_dimension_numbers<[1], [0], [0], [1], [0, 0, 1, 1], [], []>} : vector<128x4xbf16>, vector<4x128xbf16>, vector<128x128xf32> -> vector<128x128xf32>
    %51 = arith.addf %48, %50 : vector<128x128xf32>
    %52 = vector.extract_strided_slice %9 {offsets = [32, 0], sizes = [128, 4], strides = [1, 1]} : vector<160x4xbf16> to vector<128x4xbf16>
    %cst_30 = arith.constant dense<0.000000e+00> : vector<128x128xf32>
    %53 = tpu.matmul %52, %28, %cst_30 {dimension_numbers = #tpu.dot_dimension_numbers<[1], [0], [0], [1], [0, 0, 1, 1], [], []>} : vector<128x4xbf16>, vector<4x128xbf16>, vector<128x128xf32> -> vector<128x128xf32>
    %54 = arith.addf %51, %53 : vector<128x128xf32>
    %55 = vector.extract_strided_slice %11 {offsets = [32, 0], sizes = [128, 4], strides = [1, 1]} : vector<160x4xbf16> to vector<128x4xbf16>
    %cst_31 = arith.constant dense<0.000000e+00> : vector<128x128xf32>
    %56 = tpu.matmul %55, %30, %cst_31 {dimension_numbers = #tpu.dot_dimension_numbers<[1], [0], [0], [1], [0, 0, 1, 1], [], []>} : vector<128x4xbf16>, vector<4x128xbf16>, vector<128x128xf32> -> vector<128x128xf32>
    %57 = arith.addf %54, %56 : vector<128x128xf32>
    %58 = vector.extract_strided_slice %13 {offsets = [32, 0], sizes = [128, 4], strides = [1, 1]} : vector<160x4xbf16> to vector<128x4xbf16>
    %cst_32 = arith.constant dense<0.000000e+00> : vector<128x128xf32>
    %59 = tpu.matmul %58, %32, %cst_32 {dimension_numbers = #tpu.dot_dimension_numbers<[1], [0], [0], [1], [0, 0, 1, 1], [], []>} : vector<128x4xbf16>, vector<4x128xbf16>, vector<128x128xf32> -> vector<128x128xf32>
    %60 = arith.addf %57, %59 : vector<128x128xf32>
    %61 = vector.broadcast %14 : vector<1x128xf32> to vector<128x128xf32>
    %62 = arith.addf %60, %61 : vector<128x128xf32>
    %cst_33 = arith.constant 0.000000e+00 : f32
    %63 = vector.broadcast %cst_33 : f32 to vector<128x128xf32>
    %64 = arith.maximumf %62, %63 : vector<128x128xf32>
    %c0_34 = arith.constant 0 : index
    %c0_35 = arith.constant 0 : index
    %65 = vector.load %arg8[%c0_34, %c0_35] : memref<1x128xf32, #tpu.memory_space<vmem>>, vector<1x128xf32>
    %cst_36 = arith.constant dense<0.000000e+00> : vector<128xf32>
    %66 = vector.multi_reduction <add>, %64, %cst_36 [0] : vector<128x128xf32> to vector<128xf32>
    %67 = vector.shape_cast %66 : vector<128xf32> to vector<1x128xf32>
    %68 = arith.addf %65, %67 : vector<1x128xf32>
    %c0_37 = arith.constant 0 : index
    %c0_38 = arith.constant 0 : index
    %69 = vector.load %arg8[%c0_37, %c0_38] : memref<1x128xf32, #tpu.memory_space<vmem>>, vector<1x128xf32>
    tpu.vector_store %arg8[%c0_37, %c0_38], %68 {strides = array<i32>} : memref<1x128xf32, #tpu.memory_space<vmem>>, vector<1x128xf32>,
    %c1_i32 = arith.constant 1 : i32
    %70 = arith.cmpi eq, %arg1, %c1_i32 : i32
    %71 = arith.extui %70 : i1 to i32
    %c0_i32_39 = arith.constant 0 : i32
    %72 = arith.cmpi ne, %71, %c0_i32_39 : i32
    scf.if %72 {
      %c0_40 = arith.constant 0 : index
      %c0_41 = arith.constant 0 : index
      %73 = vector.load %arg8[%c0_40, %c0_41] : memref<1x128xf32, #tpu.memory_space<vmem>>, vector<1x128xf32>
      %cst_42 = arith.constant 3.906250e-03 : f32
      %74 = vector.broadcast %cst_42 : f32 to vector<1x128xf32>
      %75 = arith.mulf %73, %74 : vector<1x128xf32>
      %c0_43 = arith.constant 0 : index
      %c0_44 = arith.constant 0 : index
      %76 = vector.load %arg5[%c0_43, %c0_44] : memref<128x128xf32, #tpu.memory_space<vmem>>, vector<128x128xf32>
      %cst_45 = arith.constant dense<0.000000e+00> : vector<1x128xf32>
      %77 = tpu.matmul %75, %76, %cst_45 {dimension_numbers = #tpu.dot_dimension_numbers<[1], [0], [0], [1], [0, 0, 1, 1], [], []>} : vector<1x128xf32>, vector<128x128xf32>, vector<1x128xf32> -> vector<1x128xf32>
      %c0_46 = arith.constant 0 : index
      %c0_47 = arith.constant 0 : index
      %78 = vector.load %arg6[%c0_46, %c0_47] : memref<1x128xf32, #tpu.memory_space<vmem>>, vector<1x128xf32>
      %79 = arith.addf %77, %78 : vector<1x128xf32>
      %cst_48 = arith.constant dense<0xFF800000> : vector<1xf32>
      %80 = vector.multi_reduction <maximumf>, %79, %cst_48 [1] : vector<1x128xf32> to vector<1xf32>
      %81 = vector.shape_cast %80 : vector<1xf32> to vector<1x1xf32>
      %82 = vector.broadcast %81 : vector<1x1xf32> to vector<1x128xf32>
      %83 = arith.subf %79, %82 : vector<1x128xf32>
      %84 = math.exp %83 : vector<1x128xf32>
      %cst_49 = arith.constant dense<0.000000e+00> : vector<1xf32>
      %85 = vector.multi_reduction <add>, %84, %cst_49 [1] : vector<1x128xf32> to vector<1xf32>
      %86 = vector.shape_cast %85 : vector<1xf32> to vector<1x1xf32>
      %87 = tpu.reciprocal %86 : vector<1x1xf32> -> vector<1x1xf32>
      %88 = vector.broadcast %87 : vector<1x1xf32> to vector<1x128xf32>
      %89 = arith.mulf %84, %88 : vector<1x128xf32>
      %c0_50 = arith.constant 0 : index
      %c0_51 = arith.constant 0 : index
      %c0_52 = arith.constant 0 : index
      %90 = vector.load %arg7[%c0_50, %c0_51, %c0_52] : memref<1x1x128xf32, #tpu.memory_space<vmem>>, vector<1x1x128xf32>
      %91 = vector.shape_cast %90 : vector<1x1x128xf32> to vector<1x128xf32>
      %92 = vector.shape_cast %89 : vector<1x128xf32> to vector<1x1x128xf32>
      tpu.vector_store %arg7[%c0_50, %c0_51, %c0_52], %92 {strides = array<i32>} : memref<1x1x128xf32, #tpu.memory_space<vmem>>, vector<1x1x128xf32>,
    } else {
    }
    return
  }
  func.func @transform_0(%arg0: i32, %arg1: i32) -> (i32, i32, i32, i32) {
    %c0_i32 = arith.constant 0 : i32
    %c0_i32_0 = arith.constant 0 : i32
    %c0_i32_1 = arith.constant 0 : i32
    %c0_i32_2 = arith.constant 0 : i32
    return %arg0, %c0_i32, %c0_i32_0, %c0_i32_1 : i32, i32, i32, i32
  }
  func.func @transform_1(%arg0: i32, %arg1: i32) -> (i32, i32, i32) {
    %c0_i32 = arith.constant 0 : i32
    %c0_i32_0 = arith.constant 0 : i32
    %c0_i32_1 = arith.constant 0 : i32
    %c0_i32_2 = arith.constant 0 : i32
    return %c0_i32, %c0_i32_0, %c0_i32_1 : i32, i32, i32
  }
  func.func @transform_2(%arg0: i32, %arg1: i32) -> (i32, i32) {
    %c0_i32 = arith.constant 0 : i32
    %c0_i32_0 = arith.constant 0 : i32
    %c0_i32_1 = arith.constant 0 : i32
    return %c0_i32, %c0_i32_0 : i32, i32
  }
  func.func @transform_3(%arg0: i32, %arg1: i32) -> (i32, i32) {
    %c0_i32 = arith.constant 0 : i32
    %c0_i32_0 = arith.constant 0 : i32
    %c0_i32_1 = arith.constant 0 : i32
    return %c0_i32, %c0_i32_0 : i32, i32
  }
  func.func @transform_4(%arg0: i32, %arg1: i32) -> (i32, i32) {
    %c0_i32 = arith.constant 0 : i32
    %c0_i32_0 = arith.constant 0 : i32
    %c0_i32_1 = arith.constant 0 : i32
    return %c0_i32, %c0_i32_0 : i32, i32
  }
  func.func @transform_5(%arg0: i32, %arg1: i32) -> (i32, i32, i32) {
    %c0_i32 = arith.constant 0 : i32
    %c0_i32_0 = arith.constant 0 : i32
    %c0_i32_1 = arith.constant 0 : i32
    return %arg0, %c0_i32, %c0_i32_0 : i32, i32, i32
  }
}

</mosaic_0001>

<llo_original>
// kernel: keras_model_wrapper_forward.1
$region0: #{keras_model_wrapper_forward.1}
  #allocation0 [shape = 'u32[]', space=smem, size = 0x4, offset = 0x4, fixed_abs, tag = 'smem constant byte address 0x4 - core index']
  #allocation1 [shape = 'u32[144,128]{1,0:T(1,128)}', space=vmem, size = 0x12000, scoped, tag = 'internal scratch']
  #allocation2 [shape = 'f32[1,128]{1,0:T(1,128)}', space=vmem, size = 0x200, scoped, tag = 'scratch operand']
  %s0 = inlined_call_operand.vmem [shape: bf16[2,18,18,4], index: 0, kind: input, shape index: {}]
  %s1 = inlined_call_operand.vmem [shape: bf16[9,4,128], index: 1, kind: input, shape index: {}]
  %s2 = inlined_call_operand.vmem [shape: f32[1,128], index: 2, kind: input, shape index: {}]
  %s3 = inlined_call_operand.vmem [shape: f32[128,128], index: 3, kind: input, shape index: {}]
  %s4 = inlined_call_operand.vmem [shape: f32[1,128], index: 4, kind: input, shape index: {}]
  %s5 = inlined_call_operand.hbm [shape: f32[2,1,128], index: 5, kind: output, shape index: {}]
  %s6 = sld [smem:[#allocation0]]
  $region61: #{keras_model_wrapper_forward.1} parent=0
    _
  %s8 = ssub.s32 1, %s6
  %s9 = scalar_select 0, %s8, %s6
  $region1: #{keras_model_wrapper_forward.1} parent=0
    #allocation3 [shape = 'u8[1024]{0}', space=vmem, size = 0x400, scoped, tag = 'output window, operand 0']
    #allocation4 [shape = 's32[2]{0}', space=sflag, size = 0x8, scoped, tag = 'scoped memory for keras_model_wrapper_forward.1']
    %10 = vsyncpa [#allocation4], 0
    %s11 = scalar_lea.sflag [#allocation4], 1
    %12 = vsyncpa %s11, 0
    loop: start=0, step=1, limit=6
    $region2: #{keras_model_wrapper_forward.1} parent=1 // loop_pre_header
      _
    $region3: #{keras_model_wrapper_forward.1} parent=1 // loop_header
      %s14 = sphi 0, %s18
      %p15 = scmp.ge.s32.totalorder %s14, 6
      %s21 = sphi 0, %s33
      %s22 = sphi 0, %s29
      %s23 = sphi 0, %s21
      %s24 = sphi 0, %s22
      %s25 = sphi 0, %s23
      %s26 = sphi 0, %s24
      %s36 = sphi 0, %s38
      %s39 = sphi 0, %s36
      %s40 = sphi 0, %s39
      %s56 = sphi 0, %s40
      %s60 = sphi 0, %s60
      %s62 = sphi 0, %s60
      %s63 = sphi 0, %s62
      %s77 = sphi 0, %s63
      %s81 = sphi 0, %s81
      %s83 = sphi 0, %s81
      %s84 = sphi 0, %s83
      %s98 = sphi 0, %s84
      %s102 = sphi 0, %s102
      %s104 = sphi 0, %s102
      %s105 = sphi 0, %s104
      %s119 = sphi 0, %s105
      %s123 = sphi 0, %s123
      %s125 = sphi 0, %s123
      %s126 = sphi 0, %s125
      %s140 = sphi 0, %s126
      %s146 = sphi 0, %s148
      %s149 = sphi 0, %s146
      %s150 = sphi 0, %s149
      %s166 = sphi 0, %s150
    $region4: #{keras_model_wrapper_forward.1} parent=1 // loop_header_branch
      %17 = sbr.rel (%p15) target = $region8
    $region5: #{keras_model_wrapper_forward.1} parent=1 // loop_body
      %s19 = ssub.s32 %s14, 1
      %s20 = ssub.s32 %s14, 2
      %s27 = sadd.s32 1, %s22
      %p28 = scmp.ge.s32.totalorder %s27, 2
      %s29 = scalar_select %p28, 0, %s27
      %s30 = sadd.s32 1, %s21
      %s31 = scalar_select %p28, %s30, %s21
      %p32 = scmp.ge.s32.totalorder %s31, 2
      %s33 = scalar_select %p32, 0, %s31
      %s34 = ssub.s32 %s21, %s33
      %p35 = scmp.eq.s32.totalorder %s34, 0
      %s37 = sadd.s32 %s36, 1
      %s38 = scalar_select %p35, %s36, %s37
      %p41 = pneg %p35
      %p42 = scmp.eq.s32.totalorder %s14, 3
      %p43 = por %p41, %p42
      %p44 = scmp.ne.s32.totalorder %s36, %s39
      %p45 = scmp.eq.s32.totalorder %s14, 0
      %p46 = por %p44, %p45
      %p47 = scmp.ne.s32.totalorder %s36, %s39
      %p48 = scmp.eq.s32.totalorder %s19, 3
      %p49 = por %p47, %p48
      %p50 = scmp.ne.s32.totalorder %s39, %s40
      %p51 = scmp.eq.s32.totalorder %s19, 0
      %p52 = por %p50, %p51
      %p53 = scmp.ne.s32.totalorder %s39, %s40
      %p54 = scmp.eq.s32.totalorder %s20, 3
      %p55 = por %p53, %p54
      %p57 = scmp.ne.s32.totalorder %s40, %s56
      %p58 = scmp.eq.s32.totalorder %s20, 0
      %p59 = por %p57, %p58
      %s61 = sadd.s32 %s60, 1
      %p64 = scmp.eq.s32.totalorder %s14, 3
      %p65 = scmp.ne.s32.totalorder %s60, %s62
      %p66 = scmp.eq.s32.totalorder %s14, 0
      %p67 = por %p65, %p66
      %p68 = scmp.ne.s32.totalorder %s60, %s62
      %p69 = scmp.eq.s32.totalorder %s19, 3
      %p70 = por %p68, %p69
      %p71 = scmp.ne.s32.totalorder %s62, %s63
      %p72 = scmp.eq.s32.totalorder %s19, 0
      %p73 = por %p71, %p72
      %p74 = scmp.ne.s32.totalorder %s62, %s63
      %p75 = scmp.eq.s32.totalorder %s20, 3
      %p76 = por %p74, %p75
      %p78 = scmp.ne.s32.totalorder %s63, %s77
      %p79 = scmp.eq.s32.totalorder %s20, 0
      %p80 = por %p78, %p79
      %s82 = sadd.s32 %s81, 1
      %p85 = scmp.eq.s32.totalorder %s14, 3
      %p86 = scmp.ne.s32.totalorder %s81, %s83
      %p87 = scmp.eq.s32.totalorder %s14, 0
      %p88 = por %p86, %p87
      %p89 = scmp.ne.s32.totalorder %s81, %s83
      %p90 = scmp.eq.s32.totalorder %s19, 3
      %p91 = por %p89, %p90
      %p92 = scmp.ne.s32.totalorder %s83, %s84
      %p93 = scmp.eq.s32.totalorder %s19, 0
      %p94 = por %p92, %p93
      %p95 = scmp.ne.s32.totalorder %s83, %s84
      %p96 = scmp.eq.s32.totalorder %s20, 3
      %p97 = por %p95, %p96
      %p99 = scmp.ne.s32.totalorder %s84, %s98
      %p100 = scmp.eq.s32.totalorder %s20, 0
      %p101 = por %p99, %p100
      %s103 = sadd.s32 %s102, 1
      %p106 = scmp.eq.s32.totalorder %s14, 3
      %p107 = scmp.ne.s32.totalorder %s102, %s104
      %p108 = scmp.eq.s32.totalorder %s14, 0
      %p109 = por %p107, %p108
      %p110 = scmp.ne.s32.totalorder %s102, %s104
      %p111 = scmp.eq.s32.totalorder %s19, 3
      %p112 = por %p110, %p111
      %p113 = scmp.ne.s32.totalorder %s104, %s105
      %p114 = scmp.eq.s32.totalorder %s19, 0
      %p115 = por %p113, %p114
      %p116 = scmp.ne.s32.totalorder %s104, %s105
      %p117 = scmp.eq.s32.totalorder %s20, 3
      %p118 = por %p116, %p117
      %p120 = scmp.ne.s32.totalorder %s105, %s119
      %p121 = scmp.eq.s32.totalorder %s20, 0
      %p122 = por %p120, %p121
      %s124 = sadd.s32 %s123, 1
      %p127 = scmp.eq.s32.totalorder %s14, 3
      %p128 = scmp.ne.s32.totalorder %s123, %s125
      %p129 = scmp.eq.s32.totalorder %s14, 0
      %p130 = por %p128, %p129
      %p131 = scmp.ne.s32.totalorder %s123, %s125
      %p132 = scmp.eq.s32.totalorder %s19, 3
      %p133 = por %p131, %p132
      %p134 = scmp.ne.s32.totalorder %s125, %s126
      %p135 = scmp.eq.s32.totalorder %s19, 0
      %p136 = por %p134, %p135
      %p137 = scmp.ne.s32.totalorder %s125, %s126
      %p138 = scmp.eq.s32.totalorder %s20, 3
      %p139 = por %p137, %p138
      %p141 = scmp.ne.s32.totalorder %s126, %s140
      %p142 = scmp.eq.s32.totalorder %s20, 0
      %p143 = por %p141, %p142
      %s144 = ssub.s32 %s21, %s33
      %p145 = scmp.eq.s32.totalorder %s144, 0
      %s147 = sadd.s32 %s146, 1
      %s148 = scalar_select %p145, %s146, %s147
      %p151 = pneg %p145
      %p152 = scmp.eq.s32.totalorder %s14, 3
      %p153 = por %p151, %p152
      %p154 = scmp.ne.s32.totalorder %s146, %s149
      %p155 = scmp.eq.s32.totalorder %s14, 0
      %p156 = por %p154, %p155
      %p157 = scmp.ne.s32.totalorder %s146, %s149
      %p158 = scmp.eq.s32.totalorder %s19, 3
      %p159 = por %p157, %p158
      %p160 = scmp.ne.s32.totalorder %s149, %s150
      %p161 = scmp.eq.s32.totalorder %s19, 0
      %p162 = por %p160, %p161
      %p163 = scmp.ne.s32.totalorder %s149, %s150
      %p164 = scmp.eq.s32.totalorder %s20, 3
      %p165 = por %p163, %p164
      %p167 = scmp.ne.s32.totalorder %s150, %s166
      %p168 = scmp.eq.s32.totalorder %s20, 0
      %p169 = por %p167, %p168
      %p170 = scmp.le.s32.totalorder 1, %s14
      %p171 = scmp.lt.s32.totalorder %s14, 5
      %p172 = pnand %p170, %p171
      %p173 = pneg %p172
      // Predicated region
      $region9: #{keras_model_wrapper_forward.1} parent=5 // pred_check
        _
      $region10: #{keras_model_wrapper_forward.1} parent=5 // pred_check_branch
        %175 = sbr.rel (%p172) target = $region12
      $region11: #{keras_model_wrapper_forward.1} parent=5 // pred_region
        %s176 = ssub.s32 %s14, 1
        // Predicated region
        $region13: #{keras_model_wrapper_forward.1} parent=11 // pred_check
          %p177 = pneg %p73
        $region14: #{keras_model_wrapper_forward.1} parent=11 // pred_check_branch
          %179 = sbr.rel (%p177) target = $region16
        $region15: #{keras_model_wrapper_forward.1} parent=11 // pred_region
          _
        $region16: #{keras_model_wrapper_forward.1} parent=11 // pred_fallthru
          _
        // Predicated region
        $region17: #{keras_model_wrapper_forward.1} parent=11 // pred_check
          %p180 = pneg %p94
        $region18: #{keras_model_wrapper_forward.1} parent=11 // pred_check_branch
          %182 = sbr.rel (%p180) target = $region20
        $region19: #{keras_model_wrapper_forward.1} parent=11 // pred_region
          _
        $region20: #{keras_model_wrapper_forward.1} parent=11 // pred_fallthru
          _
        // Predicated region
        $region21: #{keras_model_wrapper_forward.1} parent=11 // pred_check
          %p183 = pneg %p115
        $region22: #{keras_model_wrapper_forward.1} parent=11 // pred_check_branch
          %185 = sbr.rel (%p183) target = $region24
        $region23: #{keras_model_wrapper_forward.1} parent=11 // pred_region
          _
        $region24: #{keras_model_wrapper_forward.1} parent=11 // pred_fallthru
          _
        // Predicated region
        $region25: #{keras_model_wrapper_forward.1} parent=11 // pred_check
          %p186 = pneg %p136
        $region26: #{keras_model_wrapper_forward.1} parent=11 // pred_check_branch
          %188 = sbr.rel (%p186) target = $region28
        $region27: #{keras_model_wrapper_forward.1} parent=11 // pred_region
          _
        $region28: #{keras_model_wrapper_forward.1} parent=11 // pred_fallthru
          _
      $region12: #{keras_model_wrapper_forward.1} parent=5 // pred_fallthru
        _
      %p189 = scmp.lt.s32.totalorder %s14, 4
      // Predicated region
      $region29: #{keras_model_wrapper_forward.1} parent=5 // pred_check
        %p190 = pneg %p189
      $region30: #{keras_model_wrapper_forward.1} parent=5 // pred_check_branch
        %192 = sbr.rel (%p190) target = $region32
      $region31: #{keras_model_wrapper_forward.1} parent=5 // pred_region
        // Predicated region
        $region33: #{keras_model_wrapper_forward.1} parent=31 // pred_check
          %p193 = pneg %p46
        $region34: #{keras_model_wrapper_forward.1} parent=31 // pred_check_branch
          %195 = sbr.rel (%p193) target = $region36
        $region35: #{keras_model_wrapper_forward.1} parent=31 // pred_region
          %p196 = scmp.lt.s32.totalorder %s21, 1
          %s197 = scalar_select %p196, %s21, 1
          %s198 = smul.addr %s197, 54
          %s199 = smul.addr %s198, 4
          %s200 = scalar_lea.vmem %s0, %s199
        $region36: #{keras_model_wrapper_forward.1} parent=31 // pred_fallthru
          _
      $region32: #{keras_model_wrapper_forward.1} parent=5 // pred_fallthru
        _
      %p201 = scmp.le.s32.totalorder 1, %s14
      %p202 = scmp.lt.s32.totalorder %s14, 5
      %p203 = pnand %p201, %p202
      %p204 = pneg %p203
      // Predicated region
      $region37: #{keras_model_wrapper_forward.1} parent=5 // pred_check
        _
      $region38: #{keras_model_wrapper_forward.1} parent=5 // pred_check_branch
        %206 = sbr.rel (%p203) target = $region40
      $region39: #{keras_model_wrapper_forward.1} parent=5 // pred_region
        %s207 = ssub.s32 %s14, 1
        %p208 = scmp.lt.s32.totalorder %s23, 1
        %s209 = scalar_select %p208, %s23, 1
        %s210 = smul.addr %s209, 54
        %s211 = smul.addr %s210, 4
        %s212 = scalar_lea.vmem %s0, %s211
        %p213 = pneg %p52
        %p214 = pneg %p49
        %p215 = pneg %p73
        %p216 = pneg %p70
        %p217 = pneg %p94
        %p218 = pneg %p91
        %p219 = pneg %p115
        %p220 = pneg %p112
        %p221 = pneg %p136
        %p222 = pneg %p133
        %p223 = pneg %p162
        %p224 = pneg %p159
        %s225 = sand.u32 %s149, 1
        %s226 = scalar_lea.sflag [#allocation4], %s225
        %s227 = sand.u32 %s149, 1
        %s228 = scalar_lea.vmem [#allocation3], %s227
        %p229 = scmp.lt.s32.totalorder %s23, 1
        %s230 = scalar_select %p229, %s23, 1
        %s231 = smul.addr %s230, 54
        %s232 = smul.addr %s231, 4
        %s233 = scalar_lea.vmem %s0, %s232
        %p235 = scmp.eq.s32.totalorder %s24, 0
        // Predicated region
        $region41: #{keras_model_wrapper_forward.1} parent=39 // pred_check
          %p236 = pneg %p235
        $region42: #{keras_model_wrapper_forward.1} parent=39 // pred_check_branch
          %238 = sbr.rel (%p236) target = $region44
        $region43: #{keras_model_wrapper_forward.1} parent=39 // pred_region
          %239 = vst [vmem:[#allocation2] sm:$0x1] 0.0
        $region44: #{keras_model_wrapper_forward.1} parent=39 // pred_fallthru
          _
        %s240 = smul.u32 %s24, 8
        %s241 = smul.u32 %s240, 3
        %s242 = smul.addr %s241, 4
        %s243 = scalar_lea.vmem %s233, %s242
        %v244 = vld [vmem:[%s243] sm:$0xf]
        %v245 = vld [vmem:[%s243 + $0x4] sm:$0xf]
        %v246 = vld [vmem:[%s243 + $0x8] sm:$0x1]
        %v247 = vld [vmem:[%s243 + $0xc] sm:$0xf]
        %v248 = vld [vmem:[%s243 + $0x10] sm:$0xf]
        %v249 = vld [vmem:[%s243 + $0x14] sm:$0x1]
        %v250 = vld [vmem:[%s243 + $0x18] sm:$0xf]
        %v251 = vld [vmem:[%s243 + $0x1c] sm:$0xf]
        %v252 = vld [vmem:[%s243 + $0x20] sm:$0x1]
        %v253 = vld [vmem:[%s243 + $0x24] sm:$0xf]
        %v254 = vld [vmem:[%s243 + $0x28] sm:$0xf]
        %v255 = vld [vmem:[%s243 + $0x2c] sm:$0x1]
        %v256 = vld [vmem:[%s243 + $0x30] sm:$0xf]
        %v257 = vld [vmem:[%s243 + $0x34] sm:$0xf]
        %v258 = vld [vmem:[%s243 + $0x38] sm:$0x1]
        %v259 = vld [vmem:[%s243 + $0x3c] sm:$0xf]
        %v260 = vld [vmem:[%s243 + $0x40] sm:$0xf]
        %v261 = vld [vmem:[%s243 + $0x44] sm:$0x1]
        %v262 = vld [vmem:[%s243 + $0x48] sm:$0xf]
        %v263 = vld [vmem:[%s243 + $0x4c] sm:$0xf]
        %v264 = vld [vmem:[%s243 + $0x50] sm:$0x1]
        %v265 = vld [vmem:[%s243 + $0x54] sm:$0xf]
        %v266 = vld [vmem:[%s243 + $0x58] sm:$0xf]
        %v267 = vld [vmem:[%s243 + $0x5c] sm:$0x1]
        %v268 = vld [vmem:[%s243 + $0x60] sm:$0xf]
        %v269 = vld [vmem:[%s243 + $0x64] sm:$0xf]
        %v270 = vld [vmem:[%s243 + $0x68] sm:$0x1]
        %v271 = vld [vmem:[%s243 + $0x6c] sm:$0xf]
        %v272 = vld [vmem:[%s243 + $0x70] sm:$0xf]
        %v273 = vld [vmem:[%s243 + $0x74] sm:$0x1]
        %vm274 = vsmask.f32 3328
        %vm275 = vsmask.f32 7440
        %vm276 = vmor %vm274, %vm275
        %v278 = vshrl.u32 %v244, 16
        %v280 = vrot.slane %v278, 4
        %v281 = vshll.u32 %v244, 16
        %v283 = vrot.slane %v281, 5
        %v284 = vor.u32 %v280, %v283
        %v285 = vrot.slane %v284, 4
        %v287 = vshll.u32 %v245, 16
        %v289 = vrot.slane %v287, 5
        %v290 = vsel %vm276, %v285, %v289
        %v291 = vshrl.u32 %v245, 16
        %v293 = vrot.slane %v291, 4
        %v294 = vor.u32 %v293, %v289
        %v295 = vrot.slane %v294, 4
        %v297 = vshll.u32 %v246, 16
        %v299 = vrot.slane %v297, 5
        %v300 = vsel %vm276, %v295, %v299
        %v302 = vshrl.u32 %v247, 16
        %v304 = vrot.slane %v302, 4
        %v305 = vshll.u32 %v247, 16
        %v307 = vrot.slane %v305, 5
        %v308 = vor.u32 %v304, %v307
        %v309 = vrot.slane %v308, 4
        %v311 = vshll.u32 %v248, 16
        %v313 = vrot.slane %v311, 5
        %v314 = vsel %vm276, %v309, %v313
        %v315 = vshrl.u32 %v248, 16
        %v317 = vrot.slane %v315, 4
        %v318 = vor.u32 %v317, %v313
        %v319 = vrot.slane %v318, 4
        %v321 = vshll.u32 %v249, 16
        %v323 = vrot.slane %v321, 5
        %v324 = vsel %vm276, %v319, %v323
        %v326 = vshrl.u32 %v250, 16
        %v328 = vrot.slane %v326, 4
        %v329 = vshll.u32 %v250, 16
        %v331 = vrot.slane %v329, 5
        %v332 = vor.u32 %v328, %v331
        %v333 = vrot.slane %v332, 4
        %v335 = vshll.u32 %v251, 16
        %v337 = vrot.slane %v335, 5
        %v338 = vsel %vm276, %v333, %v337
        %v339 = vshrl.u32 %v251, 16
        %v341 = vrot.slane %v339, 4
        %v342 = vor.u32 %v341, %v337
        %v343 = vrot.slane %v342, 4
        %v345 = vshll.u32 %v252, 16
        %v347 = vrot.slane %v345, 5
        %v348 = vsel %vm276, %v343, %v347
        %v350 = vshrl.u32 %v253, 16
        %v352 = vrot.slane %v350, 4
        %v353 = vshll.u32 %v253, 16
        %v355 = vrot.slane %v353, 5
        %v356 = vor.u32 %v352, %v355
        %v357 = vrot.slane %v356, 4
        %v359 = vshll.u32 %v254, 16
        %v361 = vrot.slane %v359, 5
        %v362 = vsel %vm276, %v357, %v361
        %v363 = vshrl.u32 %v254, 16
        %v365 = vrot.slane %v363, 4
        %v366 = vor.u32 %v365, %v361
        %v367 = vrot.slane %v366, 4
        %v369 = vshll.u32 %v255, 16
        %v371 = vrot.slane %v369, 5
        %v372 = vsel %vm276, %v367, %v371
        %v374 = vshrl.u32 %v256, 16
        %v376 = vrot.slane %v374, 4
        %v377 = vshll.u32 %v256, 16
        %v379 = vrot.slane %v377, 5
        %v380 = vor.u32 %v376, %v379
        %v381 = vrot.slane %v380, 4
        %v383 = vshll.u32 %v257, 16
        %v385 = vrot.slane %v383, 5
        %v386 = vsel %vm276, %v381, %v385
        %v387 = vshrl.u32 %v257, 16
        %v389 = vrot.slane %v387, 4
        %v390 = vor.u32 %v389, %v385
        %v391 = vrot.slane %v390, 4
        %v393 = vshll.u32 %v258, 16
        %v395 = vrot.slane %v393, 5
        %v396 = vsel %vm276, %v391, %v395
        %v398 = vshrl.u32 %v259, 16
        %v400 = vrot.slane %v398, 4
        %v401 = vshll.u32 %v259, 16
        %v403 = vrot.slane %v401, 5
        %v404 = vor.u32 %v400, %v403
        %v405 = vrot.slane %v404, 4
        %v407 = vshll.u32 %v260, 16
        %v409 = vrot.slane %v407, 5
        %v410 = vsel %vm276, %v405, %v409
        %v411 = vshrl.u32 %v260, 16
        %v413 = vrot.slane %v411, 4
        %v414 = vor.u32 %v413, %v409
        %v415 = vrot.slane %v414, 4
        %v417 = vshll.u32 %v261, 16
        %v419 = vrot.slane %v417, 5
        %v420 = vsel %vm276, %v415, %v419
        %v422 = vshrl.u32 %v262, 16
        %v424 = vrot.slane %v422, 4
        %v425 = vshll.u32 %v262, 16
        %v427 = vrot.slane %v425, 5
        %v428 = vor.u32 %v424, %v427
        %v429 = vrot.slane %v428, 4
        %v431 = vshll.u32 %v263, 16
        %v433 = vrot.slane %v431, 5
        %v434 = vsel %vm276, %v429, %v433
        %v435 = vshrl.u32 %v263, 16
        %v437 = vrot.slane %v435, 4
        %v438 = vor.u32 %v437, %v433
        %v439 = vrot.slane %v438, 4
        %v441 = vshll.u32 %v264, 16
        %v443 = vrot.slane %v441, 5
        %v444 = vsel %vm276, %v439, %v443
        %v446 = vshrl.u32 %v265, 16
        %v448 = vrot.slane %v446, 4
        %v449 = vshll.u32 %v265, 16
        %v451 = vrot.slane %v449, 5
        %v452 = vor.u32 %v448, %v451
        %v453 = vrot.slane %v452, 4
        %v455 = vshll.u32 %v266, 16
        %v457 = vrot.slane %v455, 5
        %v458 = vsel %vm276, %v453, %v457
        %v459 = vshrl.u32 %v266, 16
        %v461 = vrot.slane %v459, 4
        %v462 = vor.u32 %v461, %v457
        %v463 = vrot.slane %v462, 4
        %v465 = vshll.u32 %v267, 16
        %v467 = vrot.slane %v465, 5
        %v468 = vsel %vm276, %v463, %v467
        %v470 = vshrl.u32 %v268, 16
        %v472 = vrot.slane %v470, 4
        %v473 = vshll.u32 %v268, 16
        %v475 = vrot.slane %v473, 5
        %v476 = vor.u32 %v472, %v475
        %v477 = vrot.slane %v476, 4
        %v479 = vshll.u32 %v269, 16
        %v481 = vrot.slane %v479, 5
        %v482 = vsel %vm276, %v477, %v481
        %v483 = vshrl.u32 %v269, 16
        %v485 = vrot.slane %v483, 4
        %v486 = vor.u32 %v485, %v481
        %v487 = vrot.slane %v486, 4
        %v489 = vshll.u32 %v270, 16
        %v491 = vrot.slane %v489, 5
        %v492 = vsel %vm276, %v487, %v491
        %v494 = vshrl.u32 %v271, 16
        %v496 = vrot.slane %v494, 4
        %v497 = vshll.u32 %v271, 16
        %v499 = vrot.slane %v497, 5
        %v500 = vor.u32 %v496, %v499
        %v501 = vrot.slane %v500, 4
        %v503 = vshll.u32 %v272, 16
        %v505 = vrot.slane %v503, 5
        %v506 = vsel %vm276, %v501, %v505
        %v507 = vshrl.u32 %v272, 16
        %v509 = vrot.slane %v507, 4
        %v510 = vor.u32 %v509, %v505
        %v511 = vrot.slane %v510, 4
        %v513 = vshll.u32 %v273, 16
        %v515 = vrot.slane %v513, 5
        %v516 = vsel %vm276, %v511, %v515
        %vm547 = vcmask 1042432
        %vm548 = vcmask 1046532
        %vm549 = vmor %vm547, %vm548
        %v550 = vrot.slane %v244, 5
        %v551 = vrot.slane %v550, 4
        %v552 = vrot.slane %v245, 5
        %v553 = vsel %vm549, %v551, %v552
        %v554 = vrot.slane %v552, 4
        %v555 = vrot.slane %v246, 5
        %v556 = vsel %vm549, %v554, %v555
        %v557 = vrot.slane %v247, 5
        %v558 = vrot.slane %v557, 4
        %v559 = vrot.slane %v248, 5
        %v560 = vsel %vm549, %v558, %v559
        %v561 = vrot.slane %v559, 4
        %v562 = vrot.slane %v249, 5
        %v563 = vsel %vm549, %v561, %v562
        %v564 = vrot.slane %v250, 5
        %v565 = vrot.slane %v564, 4
        %v566 = vrot.slane %v251, 5
        %v567 = vsel %vm549, %v565, %v566
        %v568 = vrot.slane %v566, 4
        %v569 = vrot.slane %v252, 5
        %v570 = vsel %vm549, %v568, %v569
        %v571 = vrot.slane %v253, 5
        %v572 = vrot.slane %v571, 4
        %v573 = vrot.slane %v254, 5
        %v574 = vsel %vm549, %v572, %v573
        %v575 = vrot.slane %v573, 4
        %v576 = vrot.slane %v255, 5
        %v577 = vsel %vm549, %v575, %v576
        %v578 = vrot.slane %v256, 5
        %v579 = vrot.slane %v578, 4
        %v580 = vrot.slane %v257, 5
        %v581 = vsel %vm549, %v579, %v580
        %v582 = vrot.slane %v580, 4
        %v583 = vrot.slane %v258, 5
        %v584 = vsel %vm549, %v582, %v583
        %v585 = vrot.slane %v259, 5
        %v586 = vrot.slane %v585, 4
        %v587 = vrot.slane %v260, 5
        %v588 = vsel %vm549, %v586, %v587
        %v589 = vrot.slane %v587, 4
        %v590 = vrot.slane %v261, 5
        %v591 = vsel %vm549, %v589, %v590
        %v592 = vrot.slane %v262, 5
        %v593 = vrot.slane %v592, 4
        %v594 = vrot.slane %v263, 5
        %v595 = vsel %vm549, %v593, %v594
        %v596 = vrot.slane %v594, 4
        %v597 = vrot.slane %v264, 5
        %v598 = vsel %vm549, %v596, %v597
        %v599 = vrot.slane %v265, 5
        %v600 = vrot.slane %v599, 4
        %v601 = vrot.slane %v266, 5
        %v602 = vsel %vm549, %v600, %v601
        %v603 = vrot.slane %v601, 4
        %v604 = vrot.slane %v267, 5
        %v605 = vsel %vm549, %v603, %v604
        %v606 = vrot.slane %v268, 5
        %v607 = vrot.slane %v606, 4
        %v608 = vrot.slane %v269, 5
        %v609 = vsel %vm549, %v607, %v608
        %v610 = vrot.slane %v608, 4
        %v611 = vrot.slane %v270, 5
        %v612 = vsel %vm549, %v610, %v611
        %v613 = vrot.slane %v271, 5
        %v614 = vrot.slane %v613, 4
        %v615 = vrot.slane %v272, 5
        %v616 = vsel %vm549, %v614, %v615
        %v617 = vrot.slane %v615, 4
        %v618 = vrot.slane %v273, 5
        %v619 = vsel %vm549, %v617, %v618
        %v620 = vld [vmem:[%s2] sm:$0x1]
        %v621 = vld [vmem:[%s1] sm:$0x3]
        %s622 = scalar_lea.vmem %s1, 2
        %v623 = vld [vmem:[%s622] sm:$0x3]
        %s624 = scalar_lea.vmem %s1, 4
        %v625 = vld [vmem:[%s624] sm:$0x3]
        %s626 = scalar_lea.vmem %s1, 6
        %v627 = vld [vmem:[%s626] sm:$0x3]
        %s628 = scalar_lea.vmem %s1, 8
        %v629 = vld [vmem:[%s628] sm:$0x3]
        %s630 = scalar_lea.vmem %s1, 10
        %v631 = vld [vmem:[%s630] sm:$0x3]
        %s632 = scalar_lea.vmem %s1, 12
        %v633 = vld [vmem:[%s632] sm:$0x3]
        %s634 = scalar_lea.vmem %s1, 14
        %v635 = vld [vmem:[%s634] sm:$0x3]
        %s636 = scalar_lea.vmem %s1, 16
        %v637 = vld [vmem:[%s636] sm:$0x3]
        %v638 = vunpack.c.l.b16 %v290
        %v639 = vunpack.c.l.b16 %v300
        %v640 = vunpack.c.l.b16 %v314
        %v641 = vunpack.c.l.b16 %v324
        %v642 = vunpack.c.l.b16 %v338
        %v643 = vunpack.c.l.b16 %v348
        %v644 = vunpack.c.l.b16 %v362
        %v645 = vunpack.c.l.b16 %v372
        %v646 = vunpack.c.l.b16 %v386
        %v647 = vunpack.c.l.b16 %v396
        %v648 = vunpack.c.l.b16 %v410
        %v649 = vunpack.c.l.b16 %v420
        %v650 = vunpack.c.l.b16 %v434
        %v651 = vunpack.c.l.b16 %v444
        %v652 = vunpack.c.l.b16 %v458
        %v653 = vunpack.c.l.b16 %v468
        %v654 = vpack.c.b16 %v639, %v638
        %v655 = vpack.c.b16 %v641, %v640
        %v656 = vpack.c.b16 %v643, %v642
        %v657 = vpack.c.b16 %v645, %v644
        %v658 = vpack.c.b16 %v647, %v646
        %v659 = vpack.c.b16 %v649, %v648
        %v660 = vpack.c.b16 %v651, %v650
        %v661 = vpack.c.b16 %v653, %v652
        %vm662 = vcmask 31744
        %v664 = vsel %vm662, %v654, 0
        %v667 = vsel %vm662, %v655, 0
        %v670 = vsel %vm662, %v656, 0
        %v673 = vsel %vm662, %v657, 0
        %v676 = vsel %vm662, %v658, 0
        %v679 = vsel %vm662, %v659, 0
        %v682 = vsel %vm662, %v660, 0
        %v685 = vsel %vm662, %v661, 0
        %vm687 = vcmask 1041408
        %v689 = vsel %vm687, %v623, 0
        %691 = vmatprep.subr.bf16.mxu0 0
        %692 = vmatpush1.bf16.msra.mxu0 %v689
        %693 = vmatprep.subr.bf16.mxu0 0
        %694 = vmatpush1.bf16.msra.mxu0 0
        %695 = vmatprep.subr.bf16.mxu0 0
        %696 = vmatpush1.bf16.msra.mxu0 0
        %697 = vmatprep.subr.bf16.mxu0 0
        %698 = vmatpush1.bf16.msra.mxu0 0
        %699 = vmatprep.subr.bf16.mxu0 0
        %700 = vmatpush1.bf16.msra.mxu0 0
        %701 = vmatprep.subr.bf16.mxu0 0
        %702 = vmatpush1.bf16.msra.mxu0 0
        %703 = vmatprep.subr.bf16.mxu0 0
        %704 = vmatpush1.bf16.msra.mxu0 0
        %705 = vmatprep.subr.bf16.mxu0 0
        %706 = vmatpush1.bf16.msra.mxu0 0
        %707 = vmatprep.subr.bf16.mxu0 0
        %708 = vmatpush1.bf16.msra.mxu0 0
        %709 = vmatprep.subr.bf16.mxu0 0
        %710 = vmatpush1.bf16.msra.mxu0 0
        %711 = vmatprep.subr.bf16.mxu0 0
        %712 = vmatpush1.bf16.msra.mxu0 0
        %713 = vmatprep.subr.bf16.mxu0 0
        %714 = vmatpush1.bf16.msra.mxu0 0
        %715 = vmatprep.subr.bf16.mxu0 0
        %716 = vmatpush1.bf16.msra.mxu0 0
        %717 = vmatprep.subr.bf16.mxu0 0
        %718 = vmatpush1.bf16.msra.mxu0 0
        %719 = vmatprep.subr.bf16.mxu0 0
        %720 = vmatpush1.bf16.msra.mxu0 0
        %721 = vmatprep.subr.bf16.mxu0 0
        %722 = vmatpush1.bf16.msra.mxu0 0
        %723 = vmatprep.mubr.bf16.mxu0 0
        %724 = vmatmul.mubr.bf16.gmra.mrb[0].mxu0 %v664
        %v725 = vpop.f32.mrb[0].mxu0
        %v726 = vadd.f32 0.0, %v725
        %v727 = vpop.f32.mrb[0].mxu0
        %v728 = vpop.f32.mrb[0].mxu0
        %v729 = vadd.f32 0.0, %v728
        %v730 = vpop.f32.mrb[0].mxu0
        %731 = vmatprep.mubr.bf16.mxu0 0
        %732 = vmatmul.mubr.bf16.gmra.mrb[0].mxu0 %v667
        %v733 = vpop.f32.mrb[0].mxu0
        %v734 = vadd.f32 0.0, %v733
        %v735 = vpop.f32.mrb[0].mxu0
        %v736 = vpop.f32.mrb[0].mxu0
        %v737 = vadd.f32 0.0, %v736
        %v738 = vpop.f32.mrb[0].mxu0
        %739 = vmatprep.mubr.bf16.mxu0 0
        %740 = vmatmul.mubr.bf16.gmra.mrb[0].mxu0 %v670
        %v741 = vpop.f32.mrb[0].mxu0
        %v742 = vadd.f32 0.0, %v741
        %v743 = vpop.f32.mrb[0].mxu0
        %v744 = vpop.f32.mrb[0].mxu0
        %v745 = vadd.f32 0.0, %v744
        %v746 = vpop.f32.mrb[0].mxu0
        %747 = vmatprep.mubr.bf16.mxu0 0
        %748 = vmatmul.mubr.bf16.gmra.mrb[0].mxu0 %v673
        %v749 = vpop.f32.mrb[0].mxu0
        %v750 = vadd.f32 0.0, %v749
        %v751 = vpop.f32.mrb[0].mxu0
        %v752 = vpop.f32.mrb[0].mxu0
        %v753 = vadd.f32 0.0, %v752
        %v754 = vpop.f32.mrb[0].mxu0
        %755 = vmatprep.mubr.bf16.mxu0 0
        %756 = vmatmul.mubr.bf16.gmra.mrb[0].mxu0 %v676
        %v757 = vpop.f32.mrb[0].mxu0
        %v758 = vadd.f32 0.0, %v757
        %v759 = vpop.f32.mrb[0].mxu0
        %v760 = vpop.f32.mrb[0].mxu0
        %v761 = vadd.f32 0.0, %v760
        %v762 = vpop.f32.mrb[0].mxu0
        %763 = vmatprep.mubr.bf16.mxu0 0
        %764 = vmatmul.mubr.bf16.gmra.mrb[0].mxu0 %v679
        %v765 = vpop.f32.mrb[0].mxu0
        %v766 = vadd.f32 0.0, %v765
        %v767 = vpop.f32.mrb[0].mxu0
        %v768 = vpop.f32.mrb[0].mxu0
        %v769 = vadd.f32 0.0, %v768
        %v770 = vpop.f32.mrb[0].mxu0
        %771 = vmatprep.mubr.bf16.mxu0 0
        %772 = vmatmul.mubr.bf16.gmra.mrb[0].mxu0 %v682
        %v773 = vpop.f32.mrb[0].mxu0
        %v774 = vadd.f32 0.0, %v773
        %v775 = vpop.f32.mrb[0].mxu0
        %v776 = vpop.f32.mrb[0].mxu0
        %v777 = vadd.f32 0.0, %v776
        %v778 = vpop.f32.mrb[0].mxu0
        %779 = vmatprep.mubr.bf16.mxu0 0
        %780 = vmatmul.mubr.bf16.gmra.mrb[0].mxu0 %v685
        %v781 = vpop.f32.mrb[0].mxu0
        %v782 = vadd.f32 0.0, %v781
        %v783 = vpop.f32.mrb[0].mxu0
        %v784 = vpop.f32.mrb[0].mxu0
        %v785 = vadd.f32 0.0, %v784
        %v786 = vpop.f32.mrb[0].mxu0
        %787 = vdwg.mxu0
        %v788 = vunpack.c.l.b16 %v244
        %v789 = vunpack.c.l.b16 %v245
        %v790 = vunpack.c.l.b16 %v247
        %v791 = vunpack.c.l.b16 %v248
        %v792 = vunpack.c.l.b16 %v250
        %v793 = vunpack.c.l.b16 %v251
        %v794 = vunpack.c.l.b16 %v253
        %v795 = vunpack.c.l.b16 %v254
        %v796 = vunpack.c.l.b16 %v256
        %v797 = vunpack.c.l.b16 %v257
        %v798 = vunpack.c.l.b16 %v259
        %v799 = vunpack.c.l.b16 %v260
        %v800 = vunpack.c.l.b16 %v262
        %v801 = vunpack.c.l.b16 %v263
        %v802 = vunpack.c.l.b16 %v265
        %v803 = vunpack.c.l.b16 %v266
        %v804 = vpack.c.b16 %v789, %v788
        %v805 = vpack.c.b16 %v791, %v790
        %v806 = vpack.c.b16 %v793, %v792
        %v807 = vpack.c.b16 %v795, %v794
        %v808 = vpack.c.b16 %v797, %v796
        %v809 = vpack.c.b16 %v799, %v798
        %v810 = vpack.c.b16 %v801, %v800
        %v811 = vpack.c.b16 %v803, %v802
        %v813 = vsel %vm662, %v804, 0
        %v816 = vsel %vm662, %v805, 0
        %v819 = vsel %vm662, %v806, 0
        %v822 = vsel %vm662, %v807, 0
        %v825 = vsel %vm662, %v808, 0
        %v828 = vsel %vm662, %v809, 0
        %v831 = vsel %vm662, %v810, 0
        %v834 = vsel %vm662, %v811, 0
        %v837 = vsel %vm687, %v621, 0
        %839 = vmatprep.subr.bf16.mxu0 0
        %840 = vmatpush1.bf16.msra.mxu0 %v837
        %841 = vmatprep.subr.bf16.mxu0 0
        %842 = vmatpush1.bf16.msra.mxu0 0
        %843 = vmatprep.subr.bf16.mxu0 0
        %844 = vmatpush1.bf16.msra.mxu0 0
        %845 = vmatprep.subr.bf16.mxu0 0
        %846 = vmatpush1.bf16.msra.mxu0 0
        %847 = vmatprep.subr.bf16.mxu0 0
        %848 = vmatpush1.bf16.msra.mxu0 0
        %849 = vmatprep.subr.bf16.mxu0 0
        %850 = vmatpush1.bf16.msra.mxu0 0
        %851 = vmatprep.subr.bf16.mxu0 0
        %852 = vmatpush1.bf16.msra.mxu0 0
        %853 = vmatprep.subr.bf16.mxu0 0
        %854 = vmatpush1.bf16.msra.mxu0 0
        %855 = vmatprep.subr.bf16.mxu0 0
        %856 = vmatpush1.bf16.msra.mxu0 0
        %857 = vmatprep.subr.bf16.mxu0 0
        %858 = vmatpush1.bf16.msra.mxu0 0
        %859 = vmatprep.subr.bf16.mxu0 0
        %860 = vmatpush1.bf16.msra.mxu0 0
        %861 = vmatprep.subr.bf16.mxu0 0
        %862 = vmatpush1.bf16.msra.mxu0 0
        %863 = vmatprep.subr.bf16.mxu0 0
        %864 = vmatpush1.bf16.msra.mxu0 0
        %865 = vmatprep.subr.bf16.mxu0 0
        %866 = vmatpush1.bf16.msra.mxu0 0
        %867 = vmatprep.subr.bf16.mxu0 0
        %868 = vmatpush1.bf16.msra.mxu0 0
        %869 = vmatprep.subr.bf16.mxu0 0
        %870 = vmatpush1.bf16.msra.mxu0 0
        %871 = vmatprep.mubr.bf16.mxu0 0
        %872 = vmatmul.mubr.bf16.gmra.mrb[0].mxu0 %v813
        %v873 = vpop.f32.mrb[0].mxu0
        %v874 = vadd.f32 %v726, %v873
        %v875 = vpop.f32.mrb[0].mxu0
        %v876 = vpop.f32.mrb[0].mxu0
        %v877 = vadd.f32 %v729, %v876
        %v878 = vpop.f32.mrb[0].mxu0
        %879 = vmatprep.mubr.bf16.mxu0 0
        %880 = vmatmul.mubr.bf16.gmra.mrb[0].mxu0 %v816
        %v881 = vpop.f32.mrb[0].mxu0
        %v882 = vadd.f32 %v734, %v881
        %v883 = vpop.f32.mrb[0].mxu0
        %v884 = vpop.f32.mrb[0].mxu0
        %v885 = vadd.f32 %v737, %v884
        %v886 = vpop.f32.mrb[0].mxu0
        %887 = vmatprep.mubr.bf16.mxu0 0
        %888 = vmatmul.mubr.bf16.gmra.mrb[0].mxu0 %v819
        %v889 = vpop.f32.mrb[0].mxu0
        %v890 = vadd.f32 %v742, %v889
        %v891 = vpop.f32.mrb[0].mxu0
        %v892 = vpop.f32.mrb[0].mxu0
        %v893 = vadd.f32 %v745, %v892
        %v894 = vpop.f32.mrb[0].mxu0
        %895 = vmatprep.mubr.bf16.mxu0 0
        %896 = vmatmul.mubr.bf16.gmra.mrb[0].mxu0 %v822
        %v897 = vpop.f32.mrb[0].mxu0
        %v898 = vadd.f32 %v750, %v897
        %v899 = vpop.f32.mrb[0].mxu0
        %v900 = vpop.f32.mrb[0].mxu0
        %v901 = vadd.f32 %v753, %v900
        %v902 = vpop.f32.mrb[0].mxu0
        %903 = vmatprep.mubr.bf16.mxu0 0
        %904 = vmatmul.mubr.bf16.gmra.mrb[0].mxu0 %v825
        %v905 = vpop.f32.mrb[0].mxu0
        %v906 = vadd.f32 %v758, %v905
        %v907 = vpop.f32.mrb[0].mxu0
        %v908 = vpop.f32.mrb[0].mxu0
        %v909 = vadd.f32 %v761, %v908
        %v910 = vpop.f32.mrb[0].mxu0
        %911 = vmatprep.mubr.bf16.mxu0 0
        %912 = vmatmul.mubr.bf16.gmra.mrb[0].mxu0 %v828
        %v913 = vpop.f32.mrb[0].mxu0
        %v914 = vadd.f32 %v766, %v913
        %v915 = vpop.f32.mrb[0].mxu0
        %v916 = vpop.f32.mrb[0].mxu0
        %v917 = vadd.f32 %v769, %v916
        %v918 = vpop.f32.mrb[0].mxu0
        %919 = vmatprep.mubr.bf16.mxu0 0
        %920 = vmatmul.mubr.bf16.gmra.mrb[0].mxu0 %v831
        %v921 = vpop.f32.mrb[0].mxu0
        %v922 = vadd.f32 %v774, %v921
        %v923 = vpop.f32.mrb[0].mxu0
        %v924 = vpop.f32.mrb[0].mxu0
        %v925 = vadd.f32 %v777, %v924
        %v926 = vpop.f32.mrb[0].mxu0
        %927 = vmatprep.mubr.bf16.mxu0 0
        %928 = vmatmul.mubr.bf16.gmra.mrb[0].mxu0 %v834
        %v929 = vpop.f32.mrb[0].mxu0
        %v930 = vadd.f32 %v782, %v929
        %v931 = vpop.f32.mrb[0].mxu0
        %v932 = vpop.f32.mrb[0].mxu0
        %v933 = vadd.f32 %v785, %v932
        %v934 = vpop.f32.mrb[0].mxu0
        %935 = vdwg.mxu0
        %v936 = vunpack.c.l.b16 %v553
        %v937 = vunpack.c.l.b16 %v556
        %v938 = vunpack.c.l.b16 %v560
        %v939 = vunpack.c.l.b16 %v563
        %v940 = vunpack.c.l.b16 %v567
        %v941 = vunpack.c.l.b16 %v570
        %v942 = vunpack.c.l.b16 %v574
        %v943 = vunpack.c.l.b16 %v577
        %v944 = vunpack.c.l.b16 %v581
        %v945 = vunpack.c.l.b16 %v584
        %v946 = vunpack.c.l.b16 %v588
        %v947 = vunpack.c.l.b16 %v591
        %v948 = vunpack.c.l.b16 %v595
        %v949 = vunpack.c.l.b16 %v598
        %v950 = vunpack.c.l.b16 %v602
        %v951 = vunpack.c.l.b16 %v605
        %v952 = vpack.c.b16 %v937, %v936
        %v953 = vpack.c.b16 %v939, %v938
        %v954 = vpack.c.b16 %v941, %v940
        %v955 = vpack.c.b16 %v943, %v942
        %v956 = vpack.c.b16 %v945, %v944
        %v957 = vpack.c.b16 %v947, %v946
        %v958 = vpack.c.b16 %v949, %v948
        %v959 = vpack.c.b16 %v951, %v950
        %v961 = vsel %vm662, %v952, 0
        %v964 = vsel %vm662, %v953, 0
        %v967 = vsel %vm662, %v954, 0
        %v970 = vsel %vm662, %v955, 0
        %v973 = vsel %vm662, %v956, 0
        %v976 = vsel %vm662, %v957, 0
        %v979 = vsel %vm662, %v958, 0
        %v982 = vsel %vm662, %v959, 0
        %v985 = vsel %vm687, %v625, 0
        %987 = vmatprep.subr.bf16.mxu0 0
        %988 = vmatpush1.bf16.msra.mxu0 %v985
        %989 = vmatprep.subr.bf16.mxu0 0
        %990 = vmatpush1.bf16.msra.mxu0 0
        %991 = vmatprep.subr.bf16.mxu0 0
        %992 = vmatpush1.bf16.msra.mxu0 0
        %993 = vmatprep.subr.bf16.mxu0 0
        %994 = vmatpush1.bf16.msra.mxu0 0
        %995 = vmatprep.subr.bf16.mxu0 0
        %996 = vmatpush1.bf16.msra.mxu0 0
        %997 = vmatprep.subr.bf16.mxu0 0
        %998 = vmatpush1.bf16.msra.mxu0 0
        %999 = vmatprep.subr.bf16.mxu0 0
        %1000 = vmatpush1.bf16.msra.mxu0 0
        %1001 = vmatprep.subr.bf16.mxu0 0
        %1002 = vmatpush1.bf16.msra.mxu0 0
        %1003 = vmatprep.subr.bf16.mxu0 0
        %1004 = vmatpush1.bf16.msra.mxu0 0
        %1005 = vmatprep.subr.bf16.mxu0 0
        %1006 = vmatpush1.bf16.msra.mxu0 0
        %1007 = vmatprep.subr.bf16.mxu0 0
        %1008 = vmatpush1.bf16.msra.mxu0 0
        %1009 = vmatprep.subr.bf16.mxu0 0
        %1010 = vmatpush1.bf16.msra.mxu0 0
        %1011 = vmatprep.subr.bf16.mxu0 0
        %1012 = vmatpush1.bf16.msra.mxu0 0
        %1013 = vmatprep.subr.bf16.mxu0 0
        %1014 = vmatpush1.bf16.msra.mxu0 0
        %1015 = vmatprep.subr.bf16.mxu0 0
        %1016 = vmatpush1.bf16.msra.mxu0 0
        %1017 = vmatprep.subr.bf16.mxu0 0
        %1018 = vmatpush1.bf16.msra.mxu0 0
        %1019 = vmatprep.mubr.bf16.mxu0 0
        %1020 = vmatmul.mubr.bf16.gmra.mrb[0].mxu0 %v961
        %v1021 = vpop.f32.mrb[0].mxu0
        %v1022 = vadd.f32 0.0, %v1021
        %v1023 = vpop.f32.mrb[0].mxu0
        %v1024 = vpop.f32.mrb[0].mxu0
        %v1025 = vadd.f32 0.0, %v1024
        %v1026 = vpop.f32.mrb[0].mxu0
        %1027 = vmatprep.mubr.bf16.mxu0 0
        %1028 = vmatmul.mubr.bf16.gmra.mrb[0].mxu0 %v964
        %v1029 = vpop.f32.mrb[0].mxu0
        %v1030 = vadd.f32 0.0, %v1029
        %v1031 = vpop.f32.mrb[0].mxu0
        %v1032 = vpop.f32.mrb[0].mxu0
        %v1033 = vadd.f32 0.0, %v1032
        %v1034 = vpop.f32.mrb[0].mxu0
        %1035 = vmatprep.mubr.bf16.mxu0 0
        %1036 = vmatmul.mubr.bf16.gmra.mrb[0].mxu0 %v967
        %v1037 = vpop.f32.mrb[0].mxu0
        %v1038 = vadd.f32 0.0, %v1037
        %v1039 = vpop.f32.mrb[0].mxu0
        %v1040 = vpop.f32.mrb[0].mxu0
        %v1041 = vadd.f32 0.0, %v1040
        %v1042 = vpop.f32.mrb[0].mxu0
        %1043 = vmatprep.mubr.bf16.mxu0 0
        %1044 = vmatmul.mubr.bf16.gmra.mrb[0].mxu0 %v970
        %v1045 = vpop.f32.mrb[0].mxu0
        %v1046 = vadd.f32 0.0, %v1045
        %v1047 = vpop.f32.mrb[0].mxu0
        %v1048 = vpop.f32.mrb[0].mxu0
        %v1049 = vadd.f32 0.0, %v1048
        %v1050 = vpop.f32.mrb[0].mxu0
        %1051 = vmatprep.mubr.bf16.mxu0 0
        %1052 = vmatmul.mubr.bf16.gmra.mrb[0].mxu0 %v973
        %v1053 = vpop.f32.mrb[0].mxu0
        %v1054 = vadd.f32 0.0, %v1053
        %v1055 = vpop.f32.mrb[0].mxu0
        %v1056 = vpop.f32.mrb[0].mxu0
        %v1057 = vadd.f32 0.0, %v1056
        %v1058 = vpop.f32.mrb[0].mxu0
        %1059 = vmatprep.mubr.bf16.mxu0 0
        %1060 = vmatmul.mubr.bf16.gmra.mrb[0].mxu0 %v976
        %v1061 = vpop.f32.mrb[0].mxu0
        %v1062 = vadd.f32 0.0, %v1061
        %v1063 = vpop.f32.mrb[0].mxu0
        %v1064 = vpop.f32.mrb[0].mxu0
        %v1065 = vadd.f32 0.0, %v1064
        %v1066 = vpop.f32.mrb[0].mxu0
        %1067 = vmatprep.mubr.bf16.mxu0 0
        %1068 = vmatmul.mubr.bf16.gmra.mrb[0].mxu0 %v979
        %v1069 = vpop.f32.mrb[0].mxu0
        %v1070 = vadd.f32 0.0, %v1069
        %v1071 = vpop.f32.mrb[0].mxu0
        %v1072 = vpop.f32.mrb[0].mxu0
        %v1073 = vadd.f32 0.0, %v1072
        %v1074 = vpop.f32.mrb[0].mxu0
        %1075 = vmatprep.mubr.bf16.mxu0 0
        %1076 = vmatmul.mubr.bf16.gmra.mrb[0].mxu0 %v982
        %v1077 = vpop.f32.mrb[0].mxu0
        %v1078 = vadd.f32 0.0, %v1077
        %v1079 = vpop.f32.mrb[0].mxu0
        %v1080 = vpop.f32.mrb[0].mxu0
        %v1081 = vadd.f32 0.0, %v1080
        %v1082 = vpop.f32.mrb[0].mxu0
        %1083 = vdwg.mxu0
        %v1084 = vadd.f32 %v874, %v1022
        %v1085 = vadd.f32 %v877, %v1025
        %v1086 = vadd.f32 %v882, %v1030
        %v1087 = vadd.f32 %v885, %v1033
        %v1088 = vadd.f32 %v890, %v1038
        %v1089 = vadd.f32 %v893, %v1041
        %v1090 = vadd.f32 %v898, %v1046
        %v1091 = vadd.f32 %v901, %v1049
        %v1092 = vadd.f32 %v906, %v1054
        %v1093 = vadd.f32 %v909, %v1057
        %v1094 = vadd.f32 %v914, %v1062
        %v1095 = vadd.f32 %v917, %v1065
        %v1096 = vadd.f32 %v922, %v1070
        %v1097 = vadd.f32 %v925, %v1073
        %v1098 = vadd.f32 %v930, %v1078
        %v1099 = vadd.f32 %v933, %v1081
        %v1100 = vunpack.c.l.b16 %v268
        %v1101 = vunpack.c.l.b16 %v269
        %v1102 = vpack.c.b16 %v1101, %v1100
        %v1104 = vsel %vm662, %v1102, 0
        %v1107 = vsel %vm687, %v627, 0
        %1109 = vmatprep.subr.bf16.mxu0 0
        %1110 = vmatpush1.bf16.msra.mxu0 %v1107
        %1111 = vmatprep.subr.bf16.mxu0 0
        %1112 = vmatpush1.bf16.msra.mxu0 0
        %1113 = vmatprep.subr.bf16.mxu0 0
        %1114 = vmatpush1.bf16.msra.mxu0 0
        %1115 = vmatprep.subr.bf16.mxu0 0
        %1116 = vmatpush1.bf16.msra.mxu0 0
        %1117 = vmatprep.subr.bf16.mxu0 0
        %1118 = vmatpush1.bf16.msra.mxu0 0
        %1119 = vmatprep.subr.bf16.mxu0 0
        %1120 = vmatpush1.bf16.msra.mxu0 0
        %1121 = vmatprep.subr.bf16.mxu0 0
        %1122 = vmatpush1.bf16.msra.mxu0 0
        %1123 = vmatprep.subr.bf16.mxu0 0
        %1124 = vmatpush1.bf16.msra.mxu0 0
        %1125 = vmatprep.subr.bf16.mxu0 0
        %1126 = vmatpush1.bf16.msra.mxu0 0
        %1127 = vmatprep.subr.bf16.mxu0 0
        %1128 = vmatpush1.bf16.msra.mxu0 0
        %1129 = vmatprep.subr.bf16.mxu0 0
        %1130 = vmatpush1.bf16.msra.mxu0 0
        %1131 = vmatprep.subr.bf16.mxu0 0
        %1132 = vmatpush1.bf16.msra.mxu0 0
        %1133 = vmatprep.subr.bf16.mxu0 0
        %1134 = vmatpush1.bf16.msra.mxu0 0
        %1135 = vmatprep.subr.bf16.mxu0 0
        %1136 = vmatpush1.bf16.msra.mxu0 0
        %1137 = vmatprep.subr.bf16.mxu0 0
        %1138 = vmatpush1.bf16.msra.mxu0 0
        %1139 = vmatprep.subr.bf16.mxu0 0
        %1140 = vmatpush1.bf16.msra.mxu0 0
        %1141 = vmatprep.mubr.bf16.mxu0 0
        %1142 = vmatmul.mubr.bf16.gmra.mrb[0].mxu0 %v816
        %v1143 = vpop.f32.mrb[0].mxu0
        %v1144 = vadd.f32 0.0, %v1143
        %v1145 = vpop.f32.mrb[0].mxu0
        %v1146 = vpop.f32.mrb[0].mxu0
        %v1147 = vadd.f32 0.0, %v1146
        %v1148 = vpop.f32.mrb[0].mxu0
        %1149 = vmatprep.mubr.bf16.mxu0 0
        %1150 = vmatmul.mubr.bf16.gmra.mrb[0].mxu0 %v819
        %v1151 = vpop.f32.mrb[0].mxu0
        %v1152 = vadd.f32 0.0, %v1151
        %v1153 = vpop.f32.mrb[0].mxu0
        %v1154 = vpop.f32.mrb[0].mxu0
        %v1155 = vadd.f32 0.0, %v1154
        %v1156 = vpop.f32.mrb[0].mxu0
        %1157 = vmatprep.mubr.bf16.mxu0 0
        %1158 = vmatmul.mubr.bf16.gmra.mrb[0].mxu0 %v822
        %v1159 = vpop.f32.mrb[0].mxu0
        %v1160 = vadd.f32 0.0, %v1159
        %v1161 = vpop.f32.mrb[0].mxu0
        %v1162 = vpop.f32.mrb[0].mxu0
        %v1163 = vadd.f32 0.0, %v1162
        %v1164 = vpop.f32.mrb[0].mxu0
        %1165 = vmatprep.mubr.bf16.mxu0 0
        %1166 = vmatmul.mubr.bf16.gmra.mrb[0].mxu0 %v825
        %v1167 = vpop.f32.mrb[0].mxu0
        %v1168 = vadd.f32 0.0, %v1167
        %v1169 = vpop.f32.mrb[0].mxu0
        %v1170 = vpop.f32.mrb[0].mxu0
        %v1171 = vadd.f32 0.0, %v1170
        %v1172 = vpop.f32.mrb[0].mxu0
        %1173 = vmatprep.mubr.bf16.mxu0 0
        %1174 = vmatmul.mubr.bf16.gmra.mrb[0].mxu0 %v828
        %v1175 = vpop.f32.mrb[0].mxu0
        %v1176 = vadd.f32 0.0, %v1175
        %v1177 = vpop.f32.mrb[0].mxu0
        %v1178 = vpop.f32.mrb[0].mxu0
        %v1179 = vadd.f32 0.0, %v1178
        %v1180 = vpop.f32.mrb[0].mxu0
        %1181 = vmatprep.mubr.bf16.mxu0 0
        %1182 = vmatmul.mubr.bf16.gmra.mrb[0].mxu0 %v831
        %v1183 = vpop.f32.mrb[0].mxu0
        %v1184 = vadd.f32 0.0, %v1183
        %v1185 = vpop.f32.mrb[0].mxu0
        %v1186 = vpop.f32.mrb[0].mxu0
        %v1187 = vadd.f32 0.0, %v1186
        %v1188 = vpop.f32.mrb[0].mxu0
        %1189 = vmatprep.mubr.bf16.mxu0 0
        %1190 = vmatmul.mubr.bf16.gmra.mrb[0].mxu0 %v834
        %v1191 = vpop.f32.mrb[0].mxu0
        %v1192 = vadd.f32 0.0, %v1191
        %v1193 = vpop.f32.mrb[0].mxu0
        %v1194 = vpop.f32.mrb[0].mxu0
        %v1195 = vadd.f32 0.0, %v1194
        %v1196 = vpop.f32.mrb[0].mxu0
        %1197 = vmatprep.mubr.bf16.mxu0 0
        %1198 = vmatmul.mubr.bf16.gmra.mrb[0].mxu0 %v1104
        %v1199 = vpop.f32.mrb[0].mxu0
        %v1200 = vadd.f32 0.0, %v1199
        %v1201 = vpop.f32.mrb[0].mxu0
        %v1202 = vpop.f32.mrb[0].mxu0
        %v1203 = vadd.f32 0.0, %v1202
        %v1204 = vpop.f32.mrb[0].mxu0
        %1205 = vdwg.mxu0
        %v1206 = vadd.f32 %v1084, %v1144
        %v1207 = vadd.f32 %v1085, %v1147
        %v1208 = vadd.f32 %v1086, %v1152
        %v1209 = vadd.f32 %v1087, %v1155
        %v1210 = vadd.f32 %v1088, %v1160
        %v1211 = vadd.f32 %v1089, %v1163
        %v1212 = vadd.f32 %v1090, %v1168
        %v1213 = vadd.f32 %v1091, %v1171
        %v1214 = vadd.f32 %v1092, %v1176
        %v1215 = vadd.f32 %v1093, %v1179
        %v1216 = vadd.f32 %v1094, %v1184
        %v1217 = vadd.f32 %v1095, %v1187
        %v1218 = vadd.f32 %v1096, %v1192
        %v1219 = vadd.f32 %v1097, %v1195
        %v1220 = vadd.f32 %v1098, %v1200
        %v1221 = vadd.f32 %v1099, %v1203
        %v1222 = vunpack.c.l.b16 %v482
        %v1223 = vunpack.c.l.b16 %v492
        %v1224 = vpack.c.b16 %v1223, %v1222
        %v1226 = vsel %vm662, %v1224, 0
        %v1229 = vsel %vm687, %v629, 0
        %1231 = vmatprep.subr.bf16.mxu0 0
        %1232 = vmatpush1.bf16.msra.mxu0 %v1229
        %1233 = vmatprep.subr.bf16.mxu0 0
        %1234 = vmatpush1.bf16.msra.mxu0 0
        %1235 = vmatprep.subr.bf16.mxu0 0
        %1236 = vmatpush1.bf16.msra.mxu0 0
        %1237 = vmatprep.subr.bf16.mxu0 0
        %1238 = vmatpush1.bf16.msra.mxu0 0
        %1239 = vmatprep.subr.bf16.mxu0 0
        %1240 = vmatpush1.bf16.msra.mxu0 0
        %1241 = vmatprep.subr.bf16.mxu0 0
        %1242 = vmatpush1.bf16.msra.mxu0 0
        %1243 = vmatprep.subr.bf16.mxu0 0
        %1244 = vmatpush1.bf16.msra.mxu0 0
        %1245 = vmatprep.subr.bf16.mxu0 0
        %1246 = vmatpush1.bf16.msra.mxu0 0
        %1247 = vmatprep.subr.bf16.mxu0 0
        %1248 = vmatpush1.bf16.msra.mxu0 0
        %1249 = vmatprep.subr.bf16.mxu0 0
        %1250 = vmatpush1.bf16.msra.mxu0 0
        %1251 = vmatprep.subr.bf16.mxu0 0
        %1252 = vmatpush1.bf16.msra.mxu0 0
        %1253 = vmatprep.subr.bf16.mxu0 0
        %1254 = vmatpush1.bf16.msra.mxu0 0
        %1255 = vmatprep.subr.bf16.mxu0 0
        %1256 = vmatpush1.bf16.msra.mxu0 0
        %1257 = vmatprep.subr.bf16.mxu0 0
        %1258 = vmatpush1.bf16.msra.mxu0 0
        %1259 = vmatprep.subr.bf16.mxu0 0
        %1260 = vmatpush1.bf16.msra.mxu0 0
        %1261 = vmatprep.subr.bf16.mxu0 0
        %1262 = vmatpush1.bf16.msra.mxu0 0
        %1263 = vmatprep.mubr.bf16.mxu0 0
        %1264 = vmatmul.mubr.bf16.gmra.mrb[0].mxu0 %v667
        %v1265 = vpop.f32.mrb[0].mxu0
        %v1266 = vadd.f32 0.0, %v1265
        %v1267 = vpop.f32.mrb[0].mxu0
        %v1268 = vpop.f32.mrb[0].mxu0
        %v1269 = vadd.f32 0.0, %v1268
        %v1270 = vpop.f32.mrb[0].mxu0
        %1271 = vmatprep.mubr.bf16.mxu0 0
        %1272 = vmatmul.mubr.bf16.gmra.mrb[0].mxu0 %v670
        %v1273 = vpop.f32.mrb[0].mxu0
        %v1274 = vadd.f32 0.0, %v1273
        %v1275 = vpop.f32.mrb[0].mxu0
        %v1276 = vpop.f32.mrb[0].mxu0
        %v1277 = vadd.f32 0.0, %v1276
        %v1278 = vpop.f32.mrb[0].mxu0
        %1279 = vmatprep.mubr.bf16.mxu0 0
        %1280 = vmatmul.mubr.bf16.gmra.mrb[0].mxu0 %v673
        %v1281 = vpop.f32.mrb[0].mxu0
        %v1282 = vadd.f32 0.0, %v1281
        %v1283 = vpop.f32.mrb[0].mxu0
        %v1284 = vpop.f32.mrb[0].mxu0
        %v1285 = vadd.f32 0.0, %v1284
        %v1286 = vpop.f32.mrb[0].mxu0
        %1287 = vmatprep.mubr.bf16.mxu0 0
        %1288 = vmatmul.mubr.bf16.gmra.mrb[0].mxu0 %v676
        %v1289 = vpop.f32.mrb[0].mxu0
        %v1290 = vadd.f32 0.0, %v1289
        %v1291 = vpop.f32.mrb[0].mxu0
        %v1292 = vpop.f32.mrb[0].mxu0
        %v1293 = vadd.f32 0.0, %v1292
        %v1294 = vpop.f32.mrb[0].mxu0
        %1295 = vmatprep.mubr.bf16.mxu0 0
        %1296 = vmatmul.mubr.bf16.gmra.mrb[0].mxu0 %v679
        %v1297 = vpop.f32.mrb[0].mxu0
        %v1298 = vadd.f32 0.0, %v1297
        %v1299 = vpop.f32.mrb[0].mxu0
        %v1300 = vpop.f32.mrb[0].mxu0
        %v1301 = vadd.f32 0.0, %v1300
        %v1302 = vpop.f32.mrb[0].mxu0
        %1303 = vmatprep.mubr.bf16.mxu0 0
        %1304 = vmatmul.mubr.bf16.gmra.mrb[0].mxu0 %v682
        %v1305 = vpop.f32.mrb[0].mxu0
        %v1306 = vadd.f32 0.0, %v1305
        %v1307 = vpop.f32.mrb[0].mxu0
        %v1308 = vpop.f32.mrb[0].mxu0
        %v1309 = vadd.f32 0.0, %v1308
        %v1310 = vpop.f32.mrb[0].mxu0
        %1311 = vmatprep.mubr.bf16.mxu0 0
        %1312 = vmatmul.mubr.bf16.gmra.mrb[0].mxu0 %v685
        %v1313 = vpop.f32.mrb[0].mxu0
        %v1314 = vadd.f32 0.0, %v1313
        %v1315 = vpop.f32.mrb[0].mxu0
        %v1316 = vpop.f32.mrb[0].mxu0
        %v1317 = vadd.f32 0.0, %v1316
        %v1318 = vpop.f32.mrb[0].mxu0
        %1319 = vmatprep.mubr.bf16.mxu0 0
        %1320 = vmatmul.mubr.bf16.gmra.mrb[0].mxu0 %v1226
        %v1321 = vpop.f32.mrb[0].mxu0
        %v1322 = vadd.f32 0.0, %v1321
        %v1323 = vpop.f32.mrb[0].mxu0
        %v1324 = vpop.f32.mrb[0].mxu0
        %v1325 = vadd.f32 0.0, %v1324
        %v1326 = vpop.f32.mrb[0].mxu0
        %1327 = vdwg.mxu0
        %v1328 = vadd.f32 %v1206, %v1266
        %v1329 = vadd.f32 %v1207, %v1269
        %v1330 = vadd.f32 %v1208, %v1274
        %v1331 = vadd.f32 %v1209, %v1277
        %v1332 = vadd.f32 %v1210, %v1282
        %v1333 = vadd.f32 %v1211, %v1285
        %v1334 = vadd.f32 %v1212, %v1290
        %v1335 = vadd.f32 %v1213, %v1293
        %v1336 = vadd.f32 %v1214, %v1298
        %v1337 = vadd.f32 %v1215, %v1301
        %v1338 = vadd.f32 %v1216, %v1306
        %v1339 = vadd.f32 %v1217, %v1309
        %v1340 = vadd.f32 %v1218, %v1314
        %v1341 = vadd.f32 %v1219, %v1317
        %v1342 = vadd.f32 %v1220, %v1322
        %v1343 = vadd.f32 %v1221, %v1325
        %v1344 = vunpack.c.l.b16 %v609
        %v1345 = vunpack.c.l.b16 %v612
        %v1346 = vpack.c.b16 %v1345, %v1344
        %v1348 = vsel %vm662, %v1346, 0
        %v1351 = vsel %vm687, %v631, 0
        %1353 = vmatprep.subr.bf16.mxu0 0
        %1354 = vmatpush1.bf16.msra.mxu0 %v1351
        %1355 = vmatprep.subr.bf16.mxu0 0
        %1356 = vmatpush1.bf16.msra.mxu0 0
        %1357 = vmatprep.subr.bf16.mxu0 0
        %1358 = vmatpush1.bf16.msra.mxu0 0
        %1359 = vmatprep.subr.bf16.mxu0 0
        %1360 = vmatpush1.bf16.msra.mxu0 0
        %1361 = vmatprep.subr.bf16.mxu0 0
        %1362 = vmatpush1.bf16.msra.mxu0 0
        %1363 = vmatprep.subr.bf16.mxu0 0
        %1364 = vmatpush1.bf16.msra.mxu0 0
        %1365 = vmatprep.subr.bf16.mxu0 0
        %1366 = vmatpush1.bf16.msra.mxu0 0
        %1367 = vmatprep.subr.bf16.mxu0 0
        %1368 = vmatpush1.bf16.msra.mxu0 0
        %1369 = vmatprep.subr.bf16.mxu0 0
        %1370 = vmatpush1.bf16.msra.mxu0 0
        %1371 = vmatprep.subr.bf16.mxu0 0
        %1372 = vmatpush1.bf16.msra.mxu0 0
        %1373 = vmatprep.subr.bf16.mxu0 0
        %1374 = vmatpush1.bf16.msra.mxu0 0
        %1375 = vmatprep.subr.bf16.mxu0 0
        %1376 = vmatpush1.bf16.msra.mxu0 0
        %1377 = vmatprep.subr.bf16.mxu0 0
        %1378 = vmatpush1.bf16.msra.mxu0 0
        %1379 = vmatprep.subr.bf16.mxu0 0
        %1380 = vmatpush1.bf16.msra.mxu0 0
        %1381 = vmatprep.subr.bf16.mxu0 0
        %1382 = vmatpush1.bf16.msra.mxu0 0
        %1383 = vmatprep.subr.bf16.mxu0 0
        %1384 = vmatpush1.bf16.msra.mxu0 0
        %1385 = vmatprep.mubr.bf16.mxu0 0
        %1386 = vmatmul.mubr.bf16.gmra.mrb[0].mxu0 %v964
        %v1387 = vpop.f32.mrb[0].mxu0
        %v1388 = vadd.f32 0.0, %v1387
        %v1389 = vpop.f32.mrb[0].mxu0
        %v1390 = vpop.f32.mrb[0].mxu0
        %v1391 = vadd.f32 0.0, %v1390
        %v1392 = vpop.f32.mrb[0].mxu0
        %1393 = vmatprep.mubr.bf16.mxu0 0
        %1394 = vmatmul.mubr.bf16.gmra.mrb[0].mxu0 %v967
        %v1395 = vpop.f32.mrb[0].mxu0
        %v1396 = vadd.f32 0.0, %v1395
        %v1397 = vpop.f32.mrb[0].mxu0
        %v1398 = vpop.f32.mrb[0].mxu0
        %v1399 = vadd.f32 0.0, %v1398
        %v1400 = vpop.f32.mrb[0].mxu0
        %1401 = vmatprep.mubr.bf16.mxu0 0
        %1402 = vmatmul.mubr.bf16.gmra.mrb[0].mxu0 %v970
        %v1403 = vpop.f32.mrb[0].mxu0
        %v1404 = vadd.f32 0.0, %v1403
        %v1405 = vpop.f32.mrb[0].mxu0
        %v1406 = vpop.f32.mrb[0].mxu0
        %v1407 = vadd.f32 0.0, %v1406
        %v1408 = vpop.f32.mrb[0].mxu0
        %1409 = vmatprep.mubr.bf16.mxu0 0
        %1410 = vmatmul.mubr.bf16.gmra.mrb[0].mxu0 %v973
        %v1411 = vpop.f32.mrb[0].mxu0
        %v1412 = vadd.f32 0.0, %v1411
        %v1413 = vpop.f32.mrb[0].mxu0
        %v1414 = vpop.f32.mrb[0].mxu0
        %v1415 = vadd.f32 0.0, %v1414
        %v1416 = vpop.f32.mrb[0].mxu0
        %1417 = vmatprep.mubr.bf16.mxu0 0
        %1418 = vmatmul.mubr.bf16.gmra.mrb[0].mxu0 %v976
        %v1419 = vpop.f32.mrb[0].mxu0
        %v1420 = vadd.f32 0.0, %v1419
        %v1421 = vpop.f32.mrb[0].mxu0
        %v1422 = vpop.f32.mrb[0].mxu0
        %v1423 = vadd.f32 0.0, %v1422
        %v1424 = vpop.f32.mrb[0].mxu0
        %1425 = vmatprep.mubr.bf16.mxu0 0
        %1426 = vmatmul.mubr.bf16.gmra.mrb[0].mxu0 %v979
        %v1427 = vpop.f32.mrb[0].mxu0
        %v1428 = vadd.f32 0.0, %v1427
        %v1429 = vpop.f32.mrb[0].mxu0
        %v1430 = vpop.f32.mrb[0].mxu0
        %v1431 = vadd.f32 0.0, %v1430
        %v1432 = vpop.f32.mrb[0].mxu0
        %1433 = vmatprep.mubr.bf16.mxu0 0
        %1434 = vmatmul.mubr.bf16.gmra.mrb[0].mxu0 %v982
        %v1435 = vpop.f32.mrb[0].mxu0
        %v1436 = vadd.f32 0.0, %v1435
        %v1437 = vpop.f32.mrb[0].mxu0
        %v1438 = vpop.f32.mrb[0].mxu0
        %v1439 = vadd.f32 0.0, %v1438
        %v1440 = vpop.f32.mrb[0].mxu0
        %1441 = vmatprep.mubr.bf16.mxu0 0
        %1442 = vmatmul.mubr.bf16.gmra.mrb[0].mxu0 %v1348
        %v1443 = vpop.f32.mrb[0].mxu0
        %v1444 = vadd.f32 0.0, %v1443
        %v1445 = vpop.f32.mrb[0].mxu0
        %v1446 = vpop.f32.mrb[0].mxu0
        %v1447 = vadd.f32 0.0, %v1446
        %v1448 = vpop.f32.mrb[0].mxu0
        %1449 = vdwg.mxu0
        %v1450 = vadd.f32 %v1328, %v1388
        %v1451 = vadd.f32 %v1329, %v1391
        %v1452 = vadd.f32 %v1330, %v1396
        %v1453 = vadd.f32 %v1331, %v1399
        %v1454 = vadd.f32 %v1332, %v1404
        %v1455 = vadd.f32 %v1333, %v1407
        %v1456 = vadd.f32 %v1334, %v1412
        %v1457 = vadd.f32 %v1335, %v1415
        %v1458 = vadd.f32 %v1336, %v1420
        %v1459 = vadd.f32 %v1337, %v1423
        %v1460 = vadd.f32 %v1338, %v1428
        %v1461 = vadd.f32 %v1339, %v1431
        %v1462 = vadd.f32 %v1340, %v1436
        %v1463 = vadd.f32 %v1341, %v1439
        %v1464 = vadd.f32 %v1342, %v1444
        %v1465 = vadd.f32 %v1343, %v1447
        %v1466 = vunpack.c.l.b16 %v271
        %v1467 = vunpack.c.l.b16 %v272
        %v1468 = vpack.c.b16 %v1467, %v1466
        %v1470 = vsel %vm662, %v1468, 0
        %v1473 = vsel %vm687, %v633, 0
        %1475 = vmatprep.subr.bf16.mxu0 0
        %1476 = vmatpush1.bf16.msra.mxu0 %v1473
        %1477 = vmatprep.subr.bf16.mxu0 0
        %1478 = vmatpush1.bf16.msra.mxu0 0
        %1479 = vmatprep.subr.bf16.mxu0 0
        %1480 = vmatpush1.bf16.msra.mxu0 0
        %1481 = vmatprep.subr.bf16.mxu0 0
        %1482 = vmatpush1.bf16.msra.mxu0 0
        %1483 = vmatprep.subr.bf16.mxu0 0
        %1484 = vmatpush1.bf16.msra.mxu0 0
        %1485 = vmatprep.subr.bf16.mxu0 0
        %1486 = vmatpush1.bf16.msra.mxu0 0
        %1487 = vmatprep.subr.bf16.mxu0 0
        %1488 = vmatpush1.bf16.msra.mxu0 0
        %1489 = vmatprep.subr.bf16.mxu0 0
        %1490 = vmatpush1.bf16.msra.mxu0 0
        %1491 = vmatprep.subr.bf16.mxu0 0
        %1492 = vmatpush1.bf16.msra.mxu0 0
        %1493 = vmatprep.subr.bf16.mxu0 0
        %1494 = vmatpush1.bf16.msra.mxu0 0
        %1495 = vmatprep.subr.bf16.mxu0 0
        %1496 = vmatpush1.bf16.msra.mxu0 0
        %1497 = vmatprep.subr.bf16.mxu0 0
        %1498 = vmatpush1.bf16.msra.mxu0 0
        %1499 = vmatprep.subr.bf16.mxu0 0
        %1500 = vmatpush1.bf16.msra.mxu0 0
        %1501 = vmatprep.subr.bf16.mxu0 0
        %1502 = vmatpush1.bf16.msra.mxu0 0
        %1503 = vmatprep.subr.bf16.mxu0 0
        %1504 = vmatpush1.bf16.msra.mxu0 0
        %1505 = vmatprep.subr.bf16.mxu0 0
        %1506 = vmatpush1.bf16.msra.mxu0 0
        %1507 = vmatprep.mubr.bf16.mxu0 0
        %1508 = vmatmul.mubr.bf16.gmra.mrb[0].mxu0 %v819
        %v1509 = vpop.f32.mrb[0].mxu0
        %v1510 = vadd.f32 0.0, %v1509
        %v1511 = vpop.f32.mrb[0].mxu0
        %v1512 = vpop.f32.mrb[0].mxu0
        %v1513 = vadd.f32 0.0, %v1512
        %v1514 = vpop.f32.mrb[0].mxu0
        %1515 = vmatprep.mubr.bf16.mxu0 0
        %1516 = vmatmul.mubr.bf16.gmra.mrb[0].mxu0 %v822
        %v1517 = vpop.f32.mrb[0].mxu0
        %v1518 = vadd.f32 0.0, %v1517
        %v1519 = vpop.f32.mrb[0].mxu0
        %v1520 = vpop.f32.mrb[0].mxu0
        %v1521 = vadd.f32 0.0, %v1520
        %v1522 = vpop.f32.mrb[0].mxu0
        %1523 = vmatprep.mubr.bf16.mxu0 0
        %1524 = vmatmul.mubr.bf16.gmra.mrb[0].mxu0 %v825
        %v1525 = vpop.f32.mrb[0].mxu0
        %v1526 = vadd.f32 0.0, %v1525
        %v1527 = vpop.f32.mrb[0].mxu0
        %v1528 = vpop.f32.mrb[0].mxu0
        %v1529 = vadd.f32 0.0, %v1528
        %v1530 = vpop.f32.mrb[0].mxu0
        %1531 = vmatprep.mubr.bf16.mxu0 0
        %1532 = vmatmul.mubr.bf16.gmra.mrb[0].mxu0 %v828
        %v1533 = vpop.f32.mrb[0].mxu0
        %v1534 = vadd.f32 0.0, %v1533
        %v1535 = vpop.f32.mrb[0].mxu0
        %v1536 = vpop.f32.mrb[0].mxu0
        %v1537 = vadd.f32 0.0, %v1536
        %v1538 = vpop.f32.mrb[0].mxu0
        %1539 = vmatprep.mubr.bf16.mxu0 0
        %1540 = vmatmul.mubr.bf16.gmra.mrb[0].mxu0 %v831
        %v1541 = vpop.f32.mrb[0].mxu0
        %v1542 = vadd.f32 0.0, %v1541
        %v1543 = vpop.f32.mrb[0].mxu0
        %v1544 = vpop.f32.mrb[0].mxu0
        %v1545 = vadd.f32 0.0, %v1544
        %v1546 = vpop.f32.mrb[0].mxu0
        %1547 = vmatprep.mubr.bf16.mxu0 0
        %1548 = vmatmul.mubr.bf16.gmra.mrb[0].mxu0 %v834
        %v1549 = vpop.f32.mrb[0].mxu0
        %v1550 = vadd.f32 0.0, %v1549
        %v1551 = vpop.f32.mrb[0].mxu0
        %v1552 = vpop.f32.mrb[0].mxu0
        %v1553 = vadd.f32 0.0, %v1552
        %v1554 = vpop.f32.mrb[0].mxu0
        %1555 = vmatprep.mubr.bf16.mxu0 0
        %1556 = vmatmul.mubr.bf16.gmra.mrb[0].mxu0 %v1104
        %v1557 = vpop.f32.mrb[0].mxu0
        %v1558 = vadd.f32 0.0, %v1557
        %v1559 = vpop.f32.mrb[0].mxu0
        %v1560 = vpop.f32.mrb[0].mxu0
        %v1561 = vadd.f32 0.0, %v1560
        %v1562 = vpop.f32.mrb[0].mxu0
        %1563 = vmatprep.mubr.bf16.mxu0 0
        %1564 = vmatmul.mubr.bf16.gmra.mrb[0].mxu0 %v1470
        %v1565 = vpop.f32.mrb[0].mxu0
        %v1566 = vadd.f32 0.0, %v1565
        %v1567 = vpop.f32.mrb[0].mxu0
        %v1568 = vpop.f32.mrb[0].mxu0
        %v1569 = vadd.f32 0.0, %v1568
        %v1570 = vpop.f32.mrb[0].mxu0
        %1571 = vdwg.mxu0
        %v1572 = vadd.f32 %v1450, %v1510
        %v1573 = vadd.f32 %v1451, %v1513
        %v1574 = vadd.f32 %v1452, %v1518
        %v1575 = vadd.f32 %v1453, %v1521
        %v1576 = vadd.f32 %v1454, %v1526
        %v1577 = vadd.f32 %v1455, %v1529
        %v1578 = vadd.f32 %v1456, %v1534
        %v1579 = vadd.f32 %v1457, %v1537
        %v1580 = vadd.f32 %v1458, %v1542
        %v1581 = vadd.f32 %v1459, %v1545
        %v1582 = vadd.f32 %v1460, %v1550
        %v1583 = vadd.f32 %v1461, %v1553
        %v1584 = vadd.f32 %v1462, %v1558
        %v1585 = vadd.f32 %v1463, %v1561
        %v1586 = vadd.f32 %v1464, %v1566
        %v1587 = vadd.f32 %v1465, %v1569
        %v1588 = vunpack.c.l.b16 %v506
        %v1589 = vunpack.c.l.b16 %v516
        %v1590 = vpack.c.b16 %v1589, %v1588
        %v1592 = vsel %vm662, %v1590, 0
        %v1595 = vsel %vm687, %v635, 0
        %1597 = vmatprep.subr.bf16.mxu0 0
        %1598 = vmatpush1.bf16.msra.mxu0 %v1595
        %1599 = vmatprep.subr.bf16.mxu0 0
        %1600 = vmatpush1.bf16.msra.mxu0 0
        %1601 = vmatprep.subr.bf16.mxu0 0
        %1602 = vmatpush1.bf16.msra.mxu0 0
        %1603 = vmatprep.subr.bf16.mxu0 0
        %1604 = vmatpush1.bf16.msra.mxu0 0
        %1605 = vmatprep.subr.bf16.mxu0 0
        %1606 = vmatpush1.bf16.msra.mxu0 0
        %1607 = vmatprep.subr.bf16.mxu0 0
        %1608 = vmatpush1.bf16.msra.mxu0 0
        %1609 = vmatprep.subr.bf16.mxu0 0
        %1610 = vmatpush1.bf16.msra.mxu0 0
        %1611 = vmatprep.subr.bf16.mxu0 0
        %1612 = vmatpush1.bf16.msra.mxu0 0
        %1613 = vmatprep.subr.bf16.mxu0 0
        %1614 = vmatpush1.bf16.msra.mxu0 0
        %1615 = vmatprep.subr.bf16.mxu0 0
        %1616 = vmatpush1.bf16.msra.mxu0 0
        %1617 = vmatprep.subr.bf16.mxu0 0
        %1618 = vmatpush1.bf16.msra.mxu0 0
        %1619 = vmatprep.subr.bf16.mxu0 0
        %1620 = vmatpush1.bf16.msra.mxu0 0
        %1621 = vmatprep.subr.bf16.mxu0 0
        %1622 = vmatpush1.bf16.msra.mxu0 0
        %1623 = vmatprep.subr.bf16.mxu0 0
        %1624 = vmatpush1.bf16.msra.mxu0 0
        %1625 = vmatprep.subr.bf16.mxu0 0
        %1626 = vmatpush1.bf16.msra.mxu0 0
        %1627 = vmatprep.subr.bf16.mxu0 0
        %1628 = vmatpush1.bf16.msra.mxu0 0
        %1629 = vmatprep.mubr.bf16.mxu0 0
        %1630 = vmatmul.mubr.bf16.gmra.mrb[0].mxu0 %v670
        %v1631 = vpop.f32.mrb[0].mxu0
        %v1632 = vadd.f32 0.0, %v1631
        %v1633 = vpop.f32.mrb[0].mxu0
        %v1634 = vpop.f32.mrb[0].mxu0
        %v1635 = vadd.f32 0.0, %v1634
        %v1636 = vpop.f32.mrb[0].mxu0
        %1637 = vmatprep.mubr.bf16.mxu0 0
        %1638 = vmatmul.mubr.bf16.gmra.mrb[0].mxu0 %v673
        %v1639 = vpop.f32.mrb[0].mxu0
        %v1640 = vadd.f32 0.0, %v1639
        %v1641 = vpop.f32.mrb[0].mxu0
        %v1642 = vpop.f32.mrb[0].mxu0
        %v1643 = vadd.f32 0.0, %v1642
        %v1644 = vpop.f32.mrb[0].mxu0
        %1645 = vmatprep.mubr.bf16.mxu0 0
        %1646 = vmatmul.mubr.bf16.gmra.mrb[0].mxu0 %v676
        %v1647 = vpop.f32.mrb[0].mxu0
        %v1648 = vadd.f32 0.0, %v1647
        %v1649 = vpop.f32.mrb[0].mxu0
        %v1650 = vpop.f32.mrb[0].mxu0
        %v1651 = vadd.f32 0.0, %v1650
        %v1652 = vpop.f32.mrb[0].mxu0
        %1653 = vmatprep.mubr.bf16.mxu0 0
        %1654 = vmatmul.mubr.bf16.gmra.mrb[0].mxu0 %v679
        %v1655 = vpop.f32.mrb[0].mxu0
        %v1656 = vadd.f32 0.0, %v1655
        %v1657 = vpop.f32.mrb[0].mxu0
        %v1658 = vpop.f32.mrb[0].mxu0
        %v1659 = vadd.f32 0.0, %v1658
        %v1660 = vpop.f32.mrb[0].mxu0
        %1661 = vmatprep.mubr.bf16.mxu0 0
        %1662 = vmatmul.mubr.bf16.gmra.mrb[0].mxu0 %v682
        %v1663 = vpop.f32.mrb[0].mxu0
        %v1664 = vadd.f32 0.0, %v1663
        %v1665 = vpop.f32.mrb[0].mxu0
        %v1666 = vpop.f32.mrb[0].mxu0
        %v1667 = vadd.f32 0.0, %v1666
        %v1668 = vpop.f32.mrb[0].mxu0
        %1669 = vmatprep.mubr.bf16.mxu0 0
        %1670 = vmatmul.mubr.bf16.gmra.mrb[0].mxu0 %v685
        %v1671 = vpop.f32.mrb[0].mxu0
        %v1672 = vadd.f32 0.0, %v1671
        %v1673 = vpop.f32.mrb[0].mxu0
        %v1674 = vpop.f32.mrb[0].mxu0
        %v1675 = vadd.f32 0.0, %v1674
        %v1676 = vpop.f32.mrb[0].mxu0
        %1677 = vmatprep.mubr.bf16.mxu0 0
        %1678 = vmatmul.mubr.bf16.gmra.mrb[0].mxu0 %v1226
        %v1679 = vpop.f32.mrb[0].mxu0
        %v1680 = vadd.f32 0.0, %v1679
        %v1681 = vpop.f32.mrb[0].mxu0
        %v1682 = vpop.f32.mrb[0].mxu0
        %v1683 = vadd.f32 0.0, %v1682
        %v1684 = vpop.f32.mrb[0].mxu0
        %1685 = vmatprep.mubr.bf16.mxu0 0
        %1686 = vmatmul.mubr.bf16.gmra.mrb[0].mxu0 %v1592
        %v1687 = vpop.f32.mrb[0].mxu0
        %v1688 = vadd.f32 0.0, %v1687
        %v1689 = vpop.f32.mrb[0].mxu0
        %v1690 = vpop.f32.mrb[0].mxu0
        %v1691 = vadd.f32 0.0, %v1690
        %v1692 = vpop.f32.mrb[0].mxu0
        %1693 = vdwg.mxu0
        %v1694 = vadd.f32 %v1572, %v1632
        %v1695 = vadd.f32 %v1573, %v1635
        %v1696 = vadd.f32 %v1574, %v1640
        %v1697 = vadd.f32 %v1575, %v1643
        %v1698 = vadd.f32 %v1576, %v1648
        %v1699 = vadd.f32 %v1577, %v1651
        %v1700 = vadd.f32 %v1578, %v1656
        %v1701 = vadd.f32 %v1579, %v1659
        %v1702 = vadd.f32 %v1580, %v1664
        %v1703 = vadd.f32 %v1581, %v1667
        %v1704 = vadd.f32 %v1582, %v1672
        %v1705 = vadd.f32 %v1583, %v1675
        %v1706 = vadd.f32 %v1584, %v1680
        %v1707 = vadd.f32 %v1585, %v1683
        %v1708 = vadd.f32 %v1586, %v1688
        %v1709 = vadd.f32 %v1587, %v1691
        %v1710 = vunpack.c.l.b16 %v616
        %v1711 = vunpack.c.l.b16 %v619
        %v1712 = vpack.c.b16 %v1711, %v1710
        %v1714 = vsel %vm662, %v1712, 0
        %v1717 = vsel %vm687, %v637, 0
        %1719 = vmatprep.subr.bf16.mxu0 0
        %1720 = vmatpush1.bf16.msra.mxu0 %v1717
        %1721 = vmatprep.subr.bf16.mxu0 0
        %1722 = vmatpush1.bf16.msra.mxu0 0
        %1723 = vmatprep.subr.bf16.mxu0 0
        %1724 = vmatpush1.bf16.msra.mxu0 0
        %1725 = vmatprep.subr.bf16.mxu0 0
        %1726 = vmatpush1.bf16.msra.mxu0 0
        %1727 = vmatprep.subr.bf16.mxu0 0
        %1728 = vmatpush1.bf16.msra.mxu0 0
        %1729 = vmatprep.subr.bf16.mxu0 0
        %1730 = vmatpush1.bf16.msra.mxu0 0
        %1731 = vmatprep.subr.bf16.mxu0 0
        %1732 = vmatpush1.bf16.msra.mxu0 0
        %1733 = vmatprep.subr.bf16.mxu0 0
        %1734 = vmatpush1.bf16.msra.mxu0 0
        %1735 = vmatprep.subr.bf16.mxu0 0
        %1736 = vmatpush1.bf16.msra.mxu0 0
        %1737 = vmatprep.subr.bf16.mxu0 0
        %1738 = vmatpush1.bf16.msra.mxu0 0
        %1739 = vmatprep.subr.bf16.mxu0 0
        %1740 = vmatpush1.bf16.msra.mxu0 0
        %1741 = vmatprep.subr.bf16.mxu0 0
        %1742 = vmatpush1.bf16.msra.mxu0 0
        %1743 = vmatprep.subr.bf16.mxu0 0
        %1744 = vmatpush1.bf16.msra.mxu0 0
        %1745 = vmatprep.subr.bf16.mxu0 0
        %1746 = vmatpush1.bf16.msra.mxu0 0
        %1747 = vmatprep.subr.bf16.mxu0 0
        %1748 = vmatpush1.bf16.msra.mxu0 0
        %1749 = vmatprep.subr.bf16.mxu0 0
        %1750 = vmatpush1.bf16.msra.mxu0 0
        %1751 = vmatprep.mubr.bf16.mxu0 0
        %1752 = vmatmul.mubr.bf16.gmra.mrb[0].mxu0 %v967
        %v1753 = vpop.f32.mrb[0].mxu0
        %v1754 = vadd.f32 0.0, %v1753
        %v1755 = vpop.f32.mrb[0].mxu0
        %v1756 = vpop.f32.mrb[0].mxu0
        %v1757 = vadd.f32 0.0, %v1756
        %v1758 = vpop.f32.mrb[0].mxu0
        %1759 = vmatprep.mubr.bf16.mxu0 0
        %1760 = vmatmul.mubr.bf16.gmra.mrb[0].mxu0 %v970
        %v1761 = vpop.f32.mrb[0].mxu0
        %v1762 = vadd.f32 0.0, %v1761
        %v1763 = vpop.f32.mrb[0].mxu0
        %v1764 = vpop.f32.mrb[0].mxu0
        %v1765 = vadd.f32 0.0, %v1764
        %v1766 = vpop.f32.mrb[0].mxu0
        %1767 = vmatprep.mubr.bf16.mxu0 0
        %1768 = vmatmul.mubr.bf16.gmra.mrb[0].mxu0 %v973
        %v1769 = vpop.f32.mrb[0].mxu0
        %v1770 = vadd.f32 0.0, %v1769
        %v1771 = vpop.f32.mrb[0].mxu0
        %v1772 = vpop.f32.mrb[0].mxu0
        %v1773 = vadd.f32 0.0, %v1772
        %v1774 = vpop.f32.mrb[0].mxu0
        %1775 = vmatprep.mubr.bf16.mxu0 0
        %1776 = vmatmul.mubr.bf16.gmra.mrb[0].mxu0 %v976
        %v1777 = vpop.f32.mrb[0].mxu0
        %v1778 = vadd.f32 0.0, %v1777
        %v1779 = vpop.f32.mrb[0].mxu0
        %v1780 = vpop.f32.mrb[0].mxu0
        %v1781 = vadd.f32 0.0, %v1780
        %v1782 = vpop.f32.mrb[0].mxu0
        %1783 = vmatprep.mubr.bf16.mxu0 0
        %1784 = vmatmul.mubr.bf16.gmra.mrb[0].mxu0 %v979
        %v1785 = vpop.f32.mrb[0].mxu0
        %v1786 = vadd.f32 0.0, %v1785
        %v1787 = vpop.f32.mrb[0].mxu0
        %v1788 = vpop.f32.mrb[0].mxu0
        %v1789 = vadd.f32 0.0, %v1788
        %v1790 = vpop.f32.mrb[0].mxu0
        %1791 = vmatprep.mubr.bf16.mxu0 0
        %1792 = vmatmul.mubr.bf16.gmra.mrb[0].mxu0 %v982
        %v1793 = vpop.f32.mrb[0].mxu0
        %v1794 = vadd.f32 0.0, %v1793
        %v1795 = vpop.f32.mrb[0].mxu0
        %v1796 = vpop.f32.mrb[0].mxu0
        %v1797 = vadd.f32 0.0, %v1796
        %v1798 = vpop.f32.mrb[0].mxu0
        %1799 = vmatprep.mubr.bf16.mxu0 0
        %1800 = vmatmul.mubr.bf16.gmra.mrb[0].mxu0 %v1348
        %v1801 = vpop.f32.mrb[0].mxu0
        %v1802 = vadd.f32 0.0, %v1801
        %v1803 = vpop.f32.mrb[0].mxu0
        %v1804 = vpop.f32.mrb[0].mxu0
        %v1805 = vadd.f32 0.0, %v1804
        %v1806 = vpop.f32.mrb[0].mxu0
        %1807 = vmatprep.mubr.bf16.mxu0 0
        %1808 = vmatmul.mubr.bf16.gmra.mrb[0].mxu0 %v1714
        %v1809 = vpop.f32.mrb[0].mxu0
        %v1810 = vadd.f32 0.0, %v1809
        %v1811 = vpop.f32.mrb[0].mxu0
        %v1812 = vpop.f32.mrb[0].mxu0
        %v1813 = vadd.f32 0.0, %v1812
        %v1814 = vpop.f32.mrb[0].mxu0
        %1815 = vdwg.mxu0
        %v1816 = vadd.f32 %v1694, %v1754
        %v1817 = vadd.f32 %v1695, %v1757
        %v1818 = vadd.f32 %v1696, %v1762
        %v1819 = vadd.f32 %v1697, %v1765
        %v1820 = vadd.f32 %v1698, %v1770
        %v1821 = vadd.f32 %v1699, %v1773
        %v1822 = vadd.f32 %v1700, %v1778
        %v1823 = vadd.f32 %v1701, %v1781
        %v1824 = vadd.f32 %v1702, %v1786
        %v1825 = vadd.f32 %v1703, %v1789
        %v1826 = vadd.f32 %v1704, %v1794
        %v1827 = vadd.f32 %v1705, %v1797
        %v1828 = vadd.f32 %v1706, %v1802
        %v1829 = vadd.f32 %v1707, %v1805
        %v1830 = vadd.f32 %v1708, %v1810
        %v1831 = vadd.f32 %v1709, %v1813
        %v1833 = vlaneseq
        %v1834 = vshrl.u32 %v1833, 7
        %v1835 = vsub.s32 0, %v1834
        %v1836 = vrot.slane %v620, %v1835
        %v1838 = vadd.f32 %v1816, %v1836
        %v1839 = vadd.f32 %v1817, %v1836
        %v1840 = vadd.f32 %v1818, %v1836
        %v1841 = vadd.f32 %v1819, %v1836
        %v1842 = vadd.f32 %v1820, %v1836
        %v1843 = vadd.f32 %v1821, %v1836
        %v1844 = vadd.f32 %v1822, %v1836
        %v1845 = vadd.f32 %v1823, %v1836
        %v1846 = vadd.f32 %v1824, %v1836
        %v1847 = vadd.f32 %v1825, %v1836
        %v1848 = vadd.f32 %v1826, %v1836
        %v1849 = vadd.f32 %v1827, %v1836
        %v1850 = vadd.f32 %v1828, %v1836
        %v1851 = vadd.f32 %v1829, %v1836
        %v1852 = vadd.f32 %v1830, %v1836
        %v1853 = vadd.f32 %v1831, %v1836
        %v1854 = vmax.f32 %v1838, 0.0
        %v1855 = vmax.f32 %v1839, 0.0
        %v1856 = vmax.f32 %v1840, 0.0
        %v1857 = vmax.f32 %v1841, 0.0
        %v1858 = vmax.f32 %v1842, 0.0
        %v1859 = vmax.f32 %v1843, 0.0
        %v1860 = vmax.f32 %v1844, 0.0
        %v1861 = vmax.f32 %v1845, 0.0
        %v1862 = vmax.f32 %v1846, 0.0
        %v1863 = vmax.f32 %v1847, 0.0
        %v1864 = vmax.f32 %v1848, 0.0
        %v1865 = vmax.f32 %v1849, 0.0
        %v1866 = vmax.f32 %v1850, 0.0
        %v1867 = vmax.f32 %v1851, 0.0
        %v1868 = vmax.f32 %v1852, 0.0
        %v1869 = vmax.f32 %v1853, 0.0
        %v1870 = vld [vmem:[#allocation2] sm:$0x1]
        %v1871 = vadd.f32 %v1854, %v1855
        %v1872 = vadd.f32 %v1871, %v1856
        %v1873 = vadd.f32 %v1872, %v1857
        %v1874 = vadd.f32 %v1873, %v1858
        %v1875 = vadd.f32 %v1874, %v1859
        %v1876 = vadd.f32 %v1875, %v1860
        %v1877 = vadd.f32 %v1876, %v1861
        %v1878 = vadd.f32 %v1877, %v1862
        %v1879 = vadd.f32 %v1878, %v1863
        %v1880 = vadd.f32 %v1879, %v1864
        %v1881 = vadd.f32 %v1880, %v1865
        %v1882 = vadd.f32 %v1881, %v1866
        %v1883 = vadd.f32 %v1882, %v1867
        %v1884 = vadd.f32 %v1883, %v1868
        %v1885 = vadd.f32 %v1884, %v1869
        %v1886 = vrot.slane %v1885, 4
        %v1887 = vadd.f32 %v1885, %v1886
        %v1888 = vrot.slane %v1887, 2
        %v1889 = vadd.f32 %v1887, %v1888
        %v1890 = vrot.slane %v1889, 1
        %v1891 = vadd.f32 %v1889, %v1890
        %v1892 = vadd.f32 %v1870, %v1891
        %1893 = vst [vmem:[#allocation2] sm:$0x1] %v1892
        %p1894 = scmp.eq.s32.totalorder %s24, 1
        // Predicated region
        $region45: #{keras_model_wrapper_forward.1} parent=39 // pred_check
          %p1895 = pneg %p1894
        $region46: #{keras_model_wrapper_forward.1} parent=39 // pred_check_branch
          %1897 = sbr.rel (%p1895) target = $region48
        $region47: #{keras_model_wrapper_forward.1} parent=39 // pred_region
          %v1898 = vld [vmem:[#allocation2] sm:$0x1]
          %v1899 = vmul.f32 %v1898, 0.00390625
          %v1900 = vld [vmem:[%s3] sm:$0xff]
          %v1901 = vld [vmem:[%s3 + $0x8] sm:$0xff]
          %v1902 = vld [vmem:[%s3 + $0x10] sm:$0xff]
          %v1903 = vld [vmem:[%s3 + $0x18] sm:$0xff]
          %v1904 = vld [vmem:[%s3 + $0x20] sm:$0xff]
          %v1905 = vld [vmem:[%s3 + $0x28] sm:$0xff]
          %v1906 = vld [vmem:[%s3 + $0x30] sm:$0xff]
          %v1907 = vld [vmem:[%s3 + $0x38] sm:$0xff]
          %v1908 = vld [vmem:[%s3 + $0x40] sm:$0xff]
          %v1909 = vld [vmem:[%s3 + $0x48] sm:$0xff]
          %v1910 = vld [vmem:[%s3 + $0x50] sm:$0xff]
          %v1911 = vld [vmem:[%s3 + $0x58] sm:$0xff]
          %v1912 = vld [vmem:[%s3 + $0x60] sm:$0xff]
          %v1913 = vld [vmem:[%s3 + $0x68] sm:$0xff]
          %v1914 = vld [vmem:[%s3 + $0x70] sm:$0xff]
          %v1915 = vld [vmem:[%s3 + $0x78] sm:$0xff]
          %v1916 = vld [vmem:[%s4] sm:$0x1]
          %1917 = vmatprep.subr.mxu0 0.0
          %1918 = vmatpush1.msra.mxu0 %v1900
          %1919 = vmatprep.subr.mxu0 0.0
          %1920 = vmatpush1.msra.mxu0 %v1901
          %1921 = vmatprep.subr.mxu0 0.0
          %1922 = vmatpush1.msra.mxu0 %v1902
          %1923 = vmatprep.subr.mxu0 0.0
          %1924 = vmatpush1.msra.mxu0 %v1903
          %1925 = vmatprep.subr.mxu0 0.0
          %1926 = vmatpush1.msra.mxu0 %v1904
          %1927 = vmatprep.subr.mxu0 0.0
          %1928 = vmatpush1.msra.mxu0 %v1905
          %1929 = vmatprep.subr.mxu0 0.0
          %1930 = vmatpush1.msra.mxu0 %v1906
          %1931 = vmatprep.subr.mxu0 0.0
          %1932 = vmatpush1.msra.mxu0 %v1907
          %1933 = vmatprep.subr.mxu0 0.0
          %1934 = vmatpush1.msra.mxu0 %v1908
          %1935 = vmatprep.subr.mxu0 0.0
          %1936 = vmatpush1.msra.mxu0 %v1909
          %1937 = vmatprep.subr.mxu0 0.0
          %1938 = vmatpush1.msra.mxu0 %v1910
          %1939 = vmatprep.subr.mxu0 0.0
          %1940 = vmatpush1.msra.mxu0 %v1911
          %1941 = vmatprep.subr.mxu0 0.0
          %1942 = vmatpush1.msra.mxu0 %v1912
          %1943 = vmatprep.subr.mxu0 0.0
          %1944 = vmatpush1.msra.mxu0 %v1913
          %1945 = vmatprep.subr.mxu0 0.0
          %1946 = vmatpush1.msra.mxu0 %v1914
          %1947 = vmatprep.subr.mxu0 0.0
          %1948 = vmatpush1.msra.mxu0 %v1915
          %1949 = vmatprep.subr.mxu0 0.0
          %1950 = vmatpush1.msra.mxu0 0.0
          %1951 = vmatprep.subr.mxu0 0.0
          %1952 = vmatpush1.msra.mxu0 0.0
          %1953 = vmatprep.subr.mxu0 0.0
          %1954 = vmatpush1.msra.mxu0 0.0
          %1955 = vmatprep.subr.mxu0 0.0
          %1956 = vmatpush1.msra.mxu0 0.0
          %1957 = vmatprep.subr.mxu0 0.0
          %1958 = vmatpush1.msra.mxu0 0.0
          %1959 = vmatprep.subr.mxu0 0.0
          %1960 = vmatpush1.msra.mxu0 0.0
          %1961 = vmatprep.subr.mxu0 0.0
          %1962 = vmatpush1.msra.mxu0 0.0
          %1963 = vmatprep.subr.mxu0 0.0
          %1964 = vmatpush1.msra.mxu0 0.0
          %1965 = vmatprep.subr.mxu0 0.0
          %1966 = vmatpush1.msra.mxu0 0.0
          %1967 = vmatprep.subr.mxu0 0.0
          %1968 = vmatpush1.msra.mxu0 0.0
          %1969 = vmatprep.subr.mxu0 0.0
          %1970 = vmatpush1.msra.mxu0 0.0
          %1971 = vmatprep.subr.mxu0 0.0
          %1972 = vmatpush1.msra.mxu0 0.0
          %1973 = vmatprep.subr.mxu0 0.0
          %1974 = vmatpush1.msra.mxu0 0.0
          %1975 = vmatprep.subr.mxu0 0.0
          %1976 = vmatpush1.msra.mxu0 0.0
          %1977 = vmatprep.subr.mxu0 0.0
          %1978 = vmatpush1.msra.mxu0 0.0
          %1979 = vmatprep.subr.mxu0 0.0
          %1980 = vmatpush1.msra.mxu0 0.0
          %1981 = vmatprep.mubr.f32.mxu0 0.0
          %1982 = vmatmul.mubr.f32.gmra.mrb[0].mxu0 %v1899
          %v1983 = vpop.f32.mrb[0].mxu0
          %v1984 = vadd.f32 %v1916, %v1983
          %v1985 = vpop.f32.mrb[0].mxu0
          %1986 = vdwg.mxu0
          %vm1987 = vcmask 1040384
          %v1988 = vsel %vm1987, %v1984, -inf
          %1989 = vmax.xlane.f32.xlu0 %v1988
          %v1990 = vpop.xlane.xlu0 %1989
          %v1991 = vsub.f32 %v1984, %v1990
          %v1992 = vmul.f32 %v1991, 1.442695
          %v1993 = vpow.pop %v1992
          %v1994 = vsel %vm1987, %v1993, 0.0
          %1995 = vadd.xlane.f32.xlu0 %v1994
          %v1996 = vpop.xlane.xlu0 %1995
          %v1997 = vrcp.pop %v1996
          %v1998 = vmul.f32 %v1993, %v1997
          %1999 = vst [vmem:[%s228] sm:$0x1] %v1998
        $region48: #{keras_model_wrapper_forward.1} parent=39 // pred_fallthru
          _
        %s2000 = sand.u32 %s149, 1
        %s2001 = scalar_lea.sflag [#allocation4], %s2000
        %s2002 = sand.u32 %s149, 1
        %s2003 = scalar_lea.vmem [#allocation3], %s2002
        // Predicated region
        $region49: #{keras_model_wrapper_forward.1} parent=39 // pred_check
          %p2004 = pneg %p159
        $region50: #{keras_model_wrapper_forward.1} parent=39 // pred_check_branch
          %2006 = sbr.rel (%p2004) target = $region52
        $region51: #{keras_model_wrapper_forward.1} parent=39 // pred_region
          %s2008 = ssub.s32 16, 16
          %2009 = vsyncadd %s2001, %s2008
          %s2010 = smul.addr %s23, 16
          %s2011 = scalar_lea.hbm %s5, %s2010
          %s2013 = sshll.u32 %s2003, 4
          %s2014 = int_to_ptr.vmem [resolvable:$true] %s2013
          %2016 = dma.vmem_to_hbm [thread:$0]  %s2014, 16, %s2011, %s2001
        $region52: #{keras_model_wrapper_forward.1} parent=39 // pred_fallthru
          _
      $region40: #{keras_model_wrapper_forward.1} parent=5 // pred_fallthru
        _
      %p2017 = scmp.le.s32.totalorder 2, %s14
      // Predicated region
      $region53: #{keras_model_wrapper_forward.1} parent=5 // pred_check
        %p2018 = pneg %p2017
      $region54: #{keras_model_wrapper_forward.1} parent=5 // pred_check_branch
        %2020 = sbr.rel (%p2018) target = $region56
      $region55: #{keras_model_wrapper_forward.1} parent=5 // pred_region
        %s2021 = ssub.s32 %s14, 2
        // Predicated region
        $region57: #{keras_model_wrapper_forward.1} parent=55 // pred_check
          %p2022 = pneg %p165
        $region58: #{keras_model_wrapper_forward.1} parent=55 // pred_check_branch
          %2024 = sbr.rel (%p2022) target = $region60
        $region59: #{keras_model_wrapper_forward.1} parent=55 // pred_region
          %s2025 = sand.u32 %s150, 1
          %s2026 = scalar_lea.sflag [#allocation4], %s2025
          %s2027 = sand.u32 %s150, 1
          %s2028 = scalar_lea.vmem [#allocation3], %s2027
          %2029 = dma.done %s2026, 16
        $region60: #{keras_model_wrapper_forward.1} parent=55 // pred_fallthru
          _
      $region56: #{keras_model_wrapper_forward.1} parent=5 // pred_fallthru
        _
    $region6: #{keras_model_wrapper_forward.1} parent=1 // loop_footer
      %s18 = sadd.s32 1, %s14
    $region7: #{keras_model_wrapper_forward.1} parent=1 // loop_footer_branch
      %13 = sbr.rel target = $region3
    $region8: #{keras_model_wrapper_forward.1} parent=1 // loop_exit
      _
    %2030 = vsyncpa [#allocation4], 1
    %s2031 = scalar_lea.sflag [#allocation4], 1
    %2032 = vsyncpa %s2031, 1

</llo_original>
